<compile_context>
chip_gen: v7x
topology: tpu7x:2x2x1
jax: 0.10.0
libtpu: 0.0.40
codegen_flags: <defaults>
</compile_context>

<pallas_src>
import functools

import jax
import jax.numpy as jnp
from jax.experimental import pallas as pl
from jax.experimental.pallas import tpu as pltpu

EPS = 1e-5


def _round_up(x, m):
    return (x + m - 1) // m * m


# --------------------------------------------------------------------------- #
# Kernel
# --------------------------------------------------------------------------- #
def _bottleneck_kernel(x_ref, xprev_ref, xnext_ref,
                       w1_ref, b1_ref, w2_ref, b2_ref, w3_ref, b3_ref,
                       out_ref, *, TL, L):
    t = pl.program_id(1)          # L-tile index within the sample
    r0 = t * TL                   # first global row of this tile

    x = x_ref[...]                # (TL, Cinp) bf16
    w1 = w1_ref[...]              # (Cinp, Pp) bf16

    # conv1 (1x1, BN1 scale pre-folded into w1) + bias + relu  -> f32 (TL, Pp)
    h1 = jnp.dot(x, w1, preferred_element_type=jnp.float32) + b1_ref[...]
    h1 = jnp.maximum(h1, 0.0)

    # zero rows past the true sequence length (L padding of the tile)
    lrow = jax.lax.broadcasted_iota(jnp.int32, (TL, 1), 0)
    h1 = jnp.where(r0 + lrow < L, h1, 0.0)

    # conv2 halo rows: h1 at global rows r0-1 and r0+TL (zero at seq boundaries)
    hprev = jnp.maximum(jnp.dot(xprev_ref[...], w1,
                                preferred_element_type=jnp.float32) + b1_ref[...], 0.0)
    hnext = jnp.maximum(jnp.dot(xnext_ref[...], w1,
                                preferred_element_type=jnp.float32) + b1_ref[...], 0.0)
    prev_gate = (t > 0).astype(jnp.float32)
    next_gate = (r0 + TL < L).astype(jnp.float32)
    prev_row = hprev[7:8] * prev_gate      # (1, Pp)  = h1[r0-1]  (or 0)
    next_row = hnext[0:1] * next_gate      # (1, Pp)  = h1[r0+TL] (or 0)

    # conv2 (k=3, pad=1): taps via sublane rolls (XLU) + one fused MXU matmul
    hm = pltpu.roll(h1, shift=1, axis=0)           # hm[l] = h1[l-1] (wrapped)
    hm = jnp.where(lrow == 0, prev_row, hm)        # fix row 0
    hp = pltpu.roll(h1, shift=TL - 1, axis=0)      # hp[l] = h1[l+1] (wrapped)
    hp = jnp.where(lrow == TL - 1, next_row, hp)   # fix last row
    hcat = jnp.concatenate([hm, h1, hp], axis=1).astype(jnp.bfloat16)  # (TL, 3*Pp)
    h2 = jnp.dot(hcat, w2_ref[...], preferred_element_type=jnp.float32) + b2_ref[...]
    h2 = jnp.maximum(h2, 0.0)

    # conv3 (1x1, BN3 scale pre-folded) + bias, residual add, final relu (f32)
    h3 = jnp.dot(h2.astype(jnp.bfloat16), w3_ref[...],
                 preferred_element_type=jnp.float32) + b3_ref[...]
    out_ref[...] = jnp.maximum(h3 + x.astype(jnp.float32), 0.0)


# --------------------------------------------------------------------------- #
# Wrappers
# --------------------------------------------------------------------------- #
def bottleneck_pallas_nlc(x_nlc, pp, *, tl_target=512):
    """x_nlc: (N, L, Cin) float32/bf16, channels last. Returns (N, L, Cout) f32."""
    N, L, Cin = x_nlc.shape
    Cinp, Pp = pp["w1"].shape
    Coutp = pp["w3"].shape[1]
    Cout = pp["Cout"]
    assert Cout == Cin, "identity residual requires inplanes == 4*planes"

    TL = tl_target if L >= tl_target else _round_up(L, 8)
    Lp = _round_up(L, TL)

    x = x_nlc.astype(jnp.bfloat16)
    if Lp != L or Cinp != Cin:
        x = jnp.pad(x, ((0, 0), (0, Lp - L), (0, Cinp - Cin)))

    nblk8 = TL // 8            # 8-row halo-block units per tile
    nlast8 = Lp // 8 - 1       # last valid 8-row block index
    grid = (N, Lp // TL)

    kernel = functools.partial(_bottleneck_kernel, TL=TL, L=L)

    flops = 2 * N * Lp * (Cinp * Pp + 3 * Pp * Pp + Pp * Coutp)
    bytes_accessed = (int(x.size) * 2 + N * Lp * Coutp * 4
                      + (pp["w1"].size + pp["w2"].size + pp["w3"].size) * 2)

    out = pl.pallas_call(
        kernel,
        out_shape=jax.ShapeDtypeStruct((N, Lp, Coutp), jnp.float32),
        grid=grid,
        in_specs=[
            # main activation tile (one sample, TL rows)
            pl.BlockSpec((None, TL, Cinp), lambda n, t: (n, t, 0)),
            # 8-row halo block ending at row r0-1 (clamped; masked when t == 0)
            pl.BlockSpec((None, 8, Cinp),
                         lambda n, t: (n, jnp.maximum(t * nblk8 - 1, 0), 0)),
            # 8-row halo block starting at row r0+TL (clamped; masked at seq end)
            pl.BlockSpec((None, 8, Cinp),
                         lambda n, t: (n, jnp.minimum((t + 1) * nblk8, nlast8), 0)),
            pl.BlockSpec((Cinp, Pp),      lambda n, t: (0, 0)),   # w1 (scale folded)
            pl.BlockSpec((1, Pp),         lambda n, t: (0, 0)),   # b1
            pl.BlockSpec((3 * Pp, Pp),    lambda n, t: (0, 0)),   # w2 (3 taps fused)
            pl.BlockSpec((1, Pp),         lambda n, t: (0, 0)),   # b2
            pl.BlockSpec((Pp, Coutp),     lambda n, t: (0, 0)),   # w3 (scale folded)
            pl.BlockSpec((1, Coutp),      lambda n, t: (0, 0)),   # b3
        ],
        out_specs=pl.BlockSpec((None, TL, Coutp), lambda n, t: (n, t, 0)),
        compiler_params=pltpu.CompilerParams(
            dimension_semantics=("parallel", "parallel")),
        cost_estimate=pl.CostEstimate(flops=flops, transcendentals=0,
                                      bytes_accessed=bytes_accessed),
    )(x, x, x, pp["w1"], pp["b1"], pp["w2"], pp["b2"], pp["w3"], pp["b3"])

    return out[:, :L, :Cout]


def bottleneck_pallas(x_ncl, pp, **kw):
    """PyTorch-interface wrapper: (N, Cin, L) -> (N, Cout, L).

    The two transposes only exist to match the NCL test interface; in a full
    model keep activations NLC and call bottleneck_pallas_nlc directly."""
    x_nlc = jnp.transpose(x_ncl, (0, 2, 1))
    out_nlc = bottleneck_pallas_nlc(x_nlc, pp, **kw)
    return jnp.transpose(out_nlc, (0, 2, 1))


# --------------------------------------------------------------------------- #
# Parameters (synthetic, PyTorch-shaped) and offline folding / padding
# --------------------------------------------------------------------------- #
def make_raw_params(key, inplanes, planes):
    ks = jax.random.split(key, 6)

    def bn_stats(k, c):
        kg, kb, km, kv = jax.random.split(k, 4)
        gamma = 1.0 + 0.1 * jax.random.normal(kg, (c,), jnp.float32)
        beta = 0.1 * jax.random.normal(kb, (c,), jnp.float32)
        mean = 0.1 * jax.random.normal(km, (c,), jnp.float32)
        var = jax.random.uniform(kv, (c,), jnp.float32, minval=0.5, maxval=1.5)
        return (gamma, beta, mean, var)

    return dict(
        W1=0.05 * jax.random.normal(ks[0], (planes, inplanes, 1), jnp.float32),
        W2=0.05 * jax.random.normal(ks[1], (planes, planes, 3), jnp.float32),
        W3=0.05 * jax.random.normal(ks[2], (planes * 4, planes, 1), jnp.float32),
        bn1=bn_stats(ks[3], planes),
        bn2=bn_stats(ks[4], planes),
        bn3=bn_stats(ks[5], planes * 4),
    )


def prepare_params(raw):
    """Fold eval-mode BN into conv weights, pad to lane-friendly sizes, cast to bf16."""
    P = raw["W2"].shape[0]
    Cin = raw["W1"].shape[1]
    Cout = raw["W3"].shape[0]
    Pp = _round_up(P, 128)
    Cinp = _round_up(Cin, 128)
    Coutp = _round_up(Cout, 128)

    def fold(p):
        g, b, m, v = p
        s = g / jnp.sqrt(v + EPS)
        return s, b - m * s

    s1, t1 = fold(raw["bn1"])
    s2, t2 = fold(raw["bn2"])
    s3, t3 = fold(raw["bn3"])

    w1 = raw["W1"][:, :, 0].T * s1[None, :]                         # (Cin, P)
    w2 = jnp.stack([raw["W2"][:, :, k].T * s2[None, :] for k in range(3)])  # (3, P, P)
    w3 = raw["W3"][:, :, 0].T * s3[None, :]                         # (P, Cout)

    w1p = jnp.zeros((Cinp, Pp), jnp.float32).at[:Cin, :P].set(w1)
    w2p = jnp.zeros((3, Pp, Pp), jnp.float32).at[:, :P, :P].set(w2)
    w3p = jnp.zeros((Pp, Coutp), jnp.float32).at[:P, :Cout].set(w3)
    b1p = jnp.zeros((1, Pp), jnp.float32).at[0, :P].set(t1)
    b2p = jnp.zeros((1, Pp), jnp.float32).at[0, :P].set(t2)
    b3p = jnp.zeros((1, Coutp), jnp.float32).at[0, :Cout].set(t3)

    return dict(w1=w1p.astype(jnp.bfloat16), b1=b1p,
                w2=w2p.reshape(3 * Pp, Pp).astype(jnp.bfloat16), b2=b2p,
                w3=w3p.astype(jnp.bfloat16), b3=b3p,
                Cin=Cin, Cout=Cout)


# --------------------------------------------------------------------------- #
# References
# --------------------------------------------------------------------------- #
def bottleneck_reference_f32(x_ncl, raw):
    """Pure f32 eval-mode PyTorch semantics (conv -> BN(running stats) -> relu)."""
    W1, W2, W3 = raw["W1"][:, :, 0], raw["W2"], raw["W3"][:, :, 0]
    L = x_ncl.shape[2]

    def bn(h, p):
        g, b, m, v = p
        s = g / jnp.sqrt(v + EPS)
        return (h - m[None, :, None]) * s[None, :, None] + b[None, :, None]

    h = jnp.einsum("ncl,pc->npl", x_ncl, W1)
    h = jnp.maximum(bn(h, raw["bn1"]), 0.0)
    hp = jnp.pad(h, ((0, 0), (0, 0), (1, 1)))
    h = sum(jnp.einsum("ncl,pc->npl", hp[:, :, k:k + L], W2[:, :, k]) for k in range(3))
    h = jnp.maximum(bn(h, raw["bn2"]), 0.0)
    h = jnp.einsum("ncl,pc->npl", h, W3)
    h = bn(h, raw["bn3"])
    return jnp.maximum(h + x_ncl, 0.0)


def bottleneck_matched_ref(x_ncl, pp):
    """Mirrors the kernel arithmetic (bf16 matmuls, f32 accumulation, folded BN)."""
    x = jnp.transpose(x_ncl, (0, 2, 1)).astype(jnp.bfloat16)        # (N, L, Cin)
    N, L, Cin = x.shape
    Cinp = pp["w1"].shape[0]
    x = jnp.pad(x, ((0, 0), (0, 0), (0, Cinp - Cin)))
    h1 = jnp.maximum(jnp.einsum("nlc,cp->nlp", x, pp["w1"],
                                preferred_element_type=jnp.float32) + pp["b1"], 0.0)
    hm = jnp.pad(h1, ((0, 0), (1, 0), (0, 0)))[:, :L]
    hp = jnp.pad(h1, ((0, 0), (0, 1), (0, 0)))[:, 1:]
    hcat = jnp.concatenate([hm, h1, hp], axis=-1).astype(jnp.bfloat16)
    h2 = jnp.maximum(jnp.einsum("nlk,kp->nlp", hcat, pp["w2"],
                                preferred_element_type=jnp.float32) + pp["b2"], 0.0)
    h3 = jnp.einsum("nlp,pc->nlc", h2.astype(jnp.bfloat16), pp["w3"],
                    preferred_element_type=jnp.float32) + pp["b3"]
    out = jnp.maximum(h3 + x.astype(jnp.float32), 0.0)
    return jnp.transpose(out[:, :, :Cin], (0, 2, 1))


# --------------------------------------------------------------------------- #
# Test harness
# --------------------------------------------------------------------------- #
if __name__ == "__main__":
    key = jax.random.PRNGKey(0)

    configs = [
        dict(N=2, planes=32, L=200),   # single L-tile per sample
        dict(N=1, planes=32, L=520),   # multi-tile: cross-tile halos + tail padding
    ]

    for i, cfg in enumerate(configs):
        kx, kp, key = jax.random.split(key, 3)
        inplanes = 4 * cfg["planes"]
        x = jax.random.normal(kx, (cfg["N"], inplanes, cfg["L"]), jnp.float32)  # NCL
        raw = make_raw_params(kp, inplanes, cfg["planes"])
        pp = prepare_params(raw)

        out = jax.block_until_ready(bottleneck_pallas(x, pp))
        assert out.shape == x.shape

        ref_match = bottleneck_matched_ref(x, pp)
        assert jnp.allclose(out, ref_match, atol=5e-3, rtol=5e-3), \
            f"cfg{i}: mismatch vs bf16-matched reference"

        ref_f32 = bottleneck_reference_f32(x, raw)
        assert jnp.allclose(out, ref_f32, atol=5e-2, rtol=5e-2), \
            f"cfg{i}: mismatch vs f32 reference"

    print("KERNEL_OK")
</pallas_src>

<mosaic_0001>
module attributes {stable_mosaic.version = 11 : i64} {
  func.func @_bottleneck_kernel(%arg0: i32, %arg1: i32, %arg2: memref<1x200x128xbf16, #tpu.memory_space<vmem>>, %arg3: memref<1x8x128xbf16, #tpu.memory_space<vmem>>, %arg4: memref<1x8x128xbf16, #tpu.memory_space<vmem>>, %arg5: memref<128x128xbf16, #tpu.memory_space<vmem>>, %arg6: memref<1x128xf32, #tpu.memory_space<vmem>>, %arg7: memref<384x128xbf16, #tpu.memory_space<vmem>>, %arg8: memref<1x128xf32, #tpu.memory_space<vmem>>, %arg9: memref<128x128xbf16, #tpu.memory_space<vmem>>, %arg10: memref<1x128xf32, #tpu.memory_space<vmem>>, %arg11: memref<1x200x128xf32, #tpu.memory_space<vmem>>) attributes {dimension_semantics = [#tpu.dimension_semantics<parallel>, #tpu.dimension_semantics<parallel>], iteration_bounds = array<i64: 2, 1>, scalar_prefetch = 0 : i64, scratch_operands = 0 : i64, tpu.core_type = #tpu.core_type<tc>, window_params = [{transform_indices = @transform_0, window_bounds = array<i64: 1, 200, 128>}, {transform_indices = @transform_1, window_bounds = array<i64: 1, 8, 128>}, {transform_indices = @transform_2, window_bounds = array<i64: 1, 8, 128>}, {pipeline_mode = #tpu.pipeline_mode<synchronous>, transform_indices = @transform_3, window_bounds = array<i64: 128, 128>}, {pipeline_mode = #tpu.pipeline_mode<synchronous>, transform_indices = @transform_4, window_bounds = array<i64: 1, 128>}, {pipeline_mode = #tpu.pipeline_mode<synchronous>, transform_indices = @transform_5, window_bounds = array<i64: 384, 128>}, {pipeline_mode = #tpu.pipeline_mode<synchronous>, transform_indices = @transform_6, window_bounds = array<i64: 1, 128>}, {pipeline_mode = #tpu.pipeline_mode<synchronous>, transform_indices = @transform_7, window_bounds = array<i64: 128, 128>}, {pipeline_mode = #tpu.pipeline_mode<synchronous>, transform_indices = @transform_8, window_bounds = array<i64: 1, 128>}, {transform_indices = @transform_9, window_bounds = array<i64: 1, 200, 128>}]} {
    %c200_i32 = arith.constant 200 : i32
    %0 = arith.muli %arg1, %c200_i32 : i32
    %c0 = arith.constant 0 : index
    %c0_0 = arith.constant 0 : index
    %c0_1 = arith.constant 0 : index
    %1 = vector.load %arg2[%c0, %c0_0, %c0_1] : memref<1x200x128xbf16, #tpu.memory_space<vmem>>, vector<1x200x128xbf16>
    %2 = vector.shape_cast %1 : vector<1x200x128xbf16> to vector<200x128xbf16>
    %c0_2 = arith.constant 0 : index
    %c0_3 = arith.constant 0 : index
    %3 = vector.load %arg5[%c0_2, %c0_3] : memref<128x128xbf16, #tpu.memory_space<vmem>>, vector<128x128xbf16>
    %cst = arith.constant dense<0.000000e+00> : vector<200x128xf32>
    %4 = tpu.matmul %2, %3, %cst {dimension_numbers = #tpu.dot_dimension_numbers<[1], [0], [0], [1], [0, 0, 1, 1], [], []>} : vector<200x128xbf16>, vector<128x128xbf16>, vector<200x128xf32> -> vector<200x128xf32>
    %c0_4 = arith.constant 0 : index
    %c0_5 = arith.constant 0 : index
    %5 = vector.load %arg6[%c0_4, %c0_5] : memref<1x128xf32, #tpu.memory_space<vmem>>, vector<1x128xf32>
    %6 = vector.broadcast %5 : vector<1x128xf32> to vector<200x128xf32>
    %7 = arith.addf %4, %6 : vector<200x128xf32>
    %cst_6 = arith.constant 0.000000e+00 : f32
    %8 = vector.broadcast %cst_6 : f32 to vector<200x128xf32>
    %9 = arith.maximumf %7, %8 : vector<200x128xf32>
    %10 = tpu.iota {dimensions = array<i32: 0>} : vector<200x1xi32>
    %11 = vector.broadcast %0 : i32 to vector<200x1xi32>
    %12 = arith.addi %11, %10 : vector<200x1xi32>
    %c200_i32_7 = arith.constant 200 : i32
    %13 = vector.broadcast %c200_i32_7 : i32 to vector<200x1xi32>
    %14 = arith.cmpi slt, %12, %13 : vector<200x1xi32>
    %cst_8 = arith.constant 0.000000e+00 : f32
    %15 = vector.shape_cast %14 : vector<200x1xi1> to vector<200x1xi1>
    %16 = vector.broadcast %15 : vector<200x1xi1> to vector<200x128xi1>
    %17 = vector.broadcast %cst_8 : f32 to vector<200x128xf32>
    %18 = arith.select %16, %9, %17 : vector<200x128xi1>, vector<200x128xf32>
    %c0_9 = arith.constant 0 : index
    %c0_10 = arith.constant 0 : index
    %c0_11 = arith.constant 0 : index
    %19 = vector.load %arg3[%c0_9, %c0_10, %c0_11] : memref<1x8x128xbf16, #tpu.memory_space<vmem>>, vector<1x8x128xbf16>
    %20 = vector.shape_cast %19 : vector<1x8x128xbf16> to vector<8x128xbf16>
    %cst_12 = arith.constant dense<0.000000e+00> : vector<8x128xf32>
    %21 = tpu.matmul %20, %3, %cst_12 {dimension_numbers = #tpu.dot_dimension_numbers<[1], [0], [0], [1], [0, 0, 1, 1], [], []>} : vector<8x128xbf16>, vector<128x128xbf16>, vector<8x128xf32> -> vector<8x128xf32>
    %c0_13 = arith.constant 0 : index
    %c0_14 = arith.constant 0 : index
    %22 = vector.load %arg6[%c0_13, %c0_14] : memref<1x128xf32, #tpu.memory_space<vmem>>, vector<1x128xf32>
    %23 = vector.broadcast %22 : vector<1x128xf32> to vector<8x128xf32>
    %24 = arith.addf %21, %23 : vector<8x128xf32>
    %cst_15 = arith.constant 0.000000e+00 : f32
    %25 = vector.broadcast %cst_15 : f32 to vector<8x128xf32>
    %26 = arith.maximumf %24, %25 : vector<8x128xf32>
    %c0_16 = arith.constant 0 : index
    %c0_17 = arith.constant 0 : index
    %c0_18 = arith.constant 0 : index
    %27 = vector.load %arg4[%c0_16, %c0_17, %c0_18] : memref<1x8x128xbf16, #tpu.memory_space<vmem>>, vector<1x8x128xbf16>
    %28 = vector.shape_cast %27 : vector<1x8x128xbf16> to vector<8x128xbf16>
    %cst_19 = arith.constant dense<0.000000e+00> : vector<8x128xf32>
    %29 = tpu.matmul %28, %3, %cst_19 {dimension_numbers = #tpu.dot_dimension_numbers<[1], [0], [0], [1], [0, 0, 1, 1], [], []>} : vector<8x128xbf16>, vector<128x128xbf16>, vector<8x128xf32> -> vector<8x128xf32>
    %c0_20 = arith.constant 0 : index
    %c0_21 = arith.constant 0 : index
    %30 = vector.load %arg6[%c0_20, %c0_21] : memref<1x128xf32, #tpu.memory_space<vmem>>, vector<1x128xf32>
    %31 = vector.broadcast %30 : vector<1x128xf32> to vector<8x128xf32>
    %32 = arith.addf %29, %31 : vector<8x128xf32>
    %cst_22 = arith.constant 0.000000e+00 : f32
    %33 = vector.broadcast %cst_22 : f32 to vector<8x128xf32>
    %34 = arith.maximumf %32, %33 : vector<8x128xf32>
    %c0_i32 = arith.constant 0 : i32
    %35 = arith.cmpi sgt, %arg1, %c0_i32 : i32
    %36 = arith.extui %35 : i1 to i32
    %37 = arith.sitofp %36 : i32 to f32
    %c200_i32_23 = arith.constant 200 : i32
    %38 = arith.addi %0, %c200_i32_23 : i32
    %c200_i32_24 = arith.constant 200 : i32
    %39 = arith.cmpi slt, %38, %c200_i32_24 : i32
    %40 = arith.extui %39 : i1 to i32
    %41 = arith.sitofp %40 : i32 to f32
    %42 = vector.extract_strided_slice %26 {offsets = [7, 0], sizes = [1, 128], strides = [1, 1]} : vector<8x128xf32> to vector<1x128xf32>
    %43 = vector.broadcast %37 : f32 to vector<1x128xf32>
    %44 = arith.mulf %42, %43 : vector<1x128xf32>
    %45 = vector.extract_strided_slice %34 {offsets = [0, 0], sizes = [1, 128], strides = [1, 1]} : vector<8x128xf32> to vector<1x128xf32>
    %46 = vector.broadcast %41 : f32 to vector<1x128xf32>
    %47 = arith.mulf %45, %46 : vector<1x128xf32>
    %c1_i32 = arith.constant 1 : i32
    %48 = tpu.dynamic_rotate %18 by %c1_i32 dim 0 : vector<200x128xf32>, i32 -> vector<200x128xf32>
    %c0_i32_25 = arith.constant 0 : i32
    %49 = vector.broadcast %c0_i32_25 : i32 to vector<200x1xi32>
    %50 = arith.cmpi eq, %10, %49 : vector<200x1xi32>
    %51 = vector.shape_cast %50 : vector<200x1xi1> to vector<200x1xi1>
    %52 = vector.broadcast %51 : vector<200x1xi1> to vector<200x128xi1>
    %53 = vector.shape_cast %44 : vector<1x128xf32> to vector<1x128xf32>
    %54 = vector.broadcast %53 : vector<1x128xf32> to vector<200x128xf32>
    %55 = arith.select %52, %54, %48 : vector<200x128xi1>, vector<200x128xf32>
    %c199_i32 = arith.constant 199 : i32
    %56 = tpu.dynamic_rotate %18 by %c199_i32 dim 0 : vector<200x128xf32>, i32 -> vector<200x128xf32>
    %c199_i32_26 = arith.constant 199 : i32
    %57 = vector.broadcast %c199_i32_26 : i32 to vector<200x1xi32>
    %58 = arith.cmpi eq, %10, %57 : vector<200x1xi32>
    %59 = vector.shape_cast %58 : vector<200x1xi1> to vector<200x1xi1>
    %60 = vector.broadcast %59 : vector<200x1xi1> to vector<200x128xi1>
    %61 = vector.shape_cast %47 : vector<1x128xf32> to vector<1x128xf32>
    %62 = vector.broadcast %61 : vector<1x128xf32> to vector<200x128xf32>
    %63 = arith.select %60, %62, %56 : vector<200x128xi1>, vector<200x128xf32>
    %64 = tpu.concatenate %55, %18, %63 in 1 : vector<200x128xf32>, vector<200x128xf32>, vector<200x128xf32> -> vector<200x384xf32>
    %65 = arith.truncf %64 : vector<200x384xf32> to vector<200x384xbf16>
    %c0_27 = arith.constant 0 : index
    %c0_28 = arith.constant 0 : index
    %66 = vector.load %arg7[%c0_27, %c0_28] : memref<384x128xbf16, #tpu.memory_space<vmem>>, vector<384x128xbf16>
    %cst_29 = arith.constant dense<0.000000e+00> : vector<200x128xf32>
    %67 = tpu.matmul %65, %66, %cst_29 {dimension_numbers = #tpu.dot_dimension_numbers<[1], [0], [0], [1], [0, 0, 1, 1], [], []>} : vector<200x384xbf16>, vector<384x128xbf16>, vector<200x128xf32> -> vector<200x128xf32>
    %c0_30 = arith.constant 0 : index
    %c0_31 = arith.constant 0 : index
    %68 = vector.load %arg8[%c0_30, %c0_31] : memref<1x128xf32, #tpu.memory_space<vmem>>, vector<1x128xf32>
    %69 = vector.broadcast %68 : vector<1x128xf32> to vector<200x128xf32>
    %70 = arith.addf %67, %69 : vector<200x128xf32>
    %cst_32 = arith.constant 0.000000e+00 : f32
    %71 = vector.broadcast %cst_32 : f32 to vector<200x128xf32>
    %72 = arith.maximumf %70, %71 : vector<200x128xf32>
    %73 = arith.truncf %72 : vector<200x128xf32> to vector<200x128xbf16>
    %c0_33 = arith.constant 0 : index
    %c0_34 = arith.constant 0 : index
    %74 = vector.load %arg9[%c0_33, %c0_34] : memref<128x128xbf16, #tpu.memory_space<vmem>>, vector<128x128xbf16>
    %cst_35 = arith.constant dense<0.000000e+00> : vector<200x128xf32>
    %75 = tpu.matmul %73, %74, %cst_35 {dimension_numbers = #tpu.dot_dimension_numbers<[1], [0], [0], [1], [0, 0, 1, 1], [], []>} : vector<200x128xbf16>, vector<128x128xbf16>, vector<200x128xf32> -> vector<200x128xf32>
    %c0_36 = arith.constant 0 : index
    %c0_37 = arith.constant 0 : index
    %76 = vector.load %arg10[%c0_36, %c0_37] : memref<1x128xf32, #tpu.memory_space<vmem>>, vector<1x128xf32>
    %77 = vector.broadcast %76 : vector<1x128xf32> to vector<200x128xf32>
    %78 = arith.addf %75, %77 : vector<200x128xf32>
    %79 = arith.extf %2 : vector<200x128xbf16> to vector<200x128xf32>
    %80 = arith.addf %78, %79 : vector<200x128xf32>
    %cst_38 = arith.constant 0.000000e+00 : f32
    %81 = vector.broadcast %cst_38 : f32 to vector<200x128xf32>
    %82 = arith.maximumf %80, %81 : vector<200x128xf32>
    %c0_39 = arith.constant 0 : index
    %c0_40 = arith.constant 0 : index
    %c0_41 = arith.constant 0 : index
    %83 = vector.load %arg11[%c0_39, %c0_40, %c0_41] : memref<1x200x128xf32, #tpu.memory_space<vmem>>, vector<1x200x128xf32>
    %84 = vector.shape_cast %83 : vector<1x200x128xf32> to vector<200x128xf32>
    %85 = vector.shape_cast %82 : vector<200x128xf32> to vector<1x200x128xf32>
    tpu.vector_store %arg11[%c0_39, %c0_40, %c0_41], %85 {strides = array<i32>} : memref<1x200x128xf32, #tpu.memory_space<vmem>>, vector<1x200x128xf32>,
    return
  }
  func.func @transform_0(%arg0: i32, %arg1: i32) -> (i32, i32, i32) {
    %c0_i32 = arith.constant 0 : i32
    %c0_i32_0 = arith.constant 0 : i32
    return %arg0, %arg1, %c0_i32 : i32, i32, i32
  }
  func.func @transform_1(%arg0: i32, %arg1: i32) -> (i32, i32, i32) {
    %c25_i32 = arith.constant 25 : i32
    %0 = arith.muli %arg1, %c25_i32 : i32
    %c1_i32 = arith.constant 1 : i32
    %1 = arith.subi %0, %c1_i32 : i32
    %c0_i32 = arith.constant 0 : i32
    %2 = arith.maxsi %1, %c0_i32 : i32
    %c0_i32_0 = arith.constant 0 : i32
    %c0_i32_1 = arith.constant 0 : i32
    return %arg0, %2, %c0_i32_0 : i32, i32, i32
  }
  func.func @transform_2(%arg0: i32, %arg1: i32) -> (i32, i32, i32) {
    %c1_i32 = arith.constant 1 : i32
    %0 = arith.addi %arg1, %c1_i32 : i32
    %c25_i32 = arith.constant 25 : i32
    %1 = arith.muli %0, %c25_i32 : i32
    %c24_i32 = arith.constant 24 : i32
    %2 = arith.minsi %1, %c24_i32 : i32
    %c0_i32 = arith.constant 0 : i32
    %c0_i32_0 = arith.constant 0 : i32
    return %arg0, %2, %c0_i32 : i32, i32, i32
  }
  func.func @transform_3(%arg0: i32, %arg1: i32) -> (i32, i32) {
    %c0_i32 = arith.constant 0 : i32
    %c0_i32_0 = arith.constant 0 : i32
    %c0_i32_1 = arith.constant 0 : i32
    return %c0_i32, %c0_i32_0 : i32, i32
  }
  func.func @transform_4(%arg0: i32, %arg1: i32) -> (i32, i32) {
    %c0_i32 = arith.constant 0 : i32
    %c0_i32_0 = arith.constant 0 : i32
    %c0_i32_1 = arith.constant 0 : i32
    return %c0_i32, %c0_i32_0 : i32, i32
  }
  func.func @transform_5(%arg0: i32, %arg1: i32) -> (i32, i32) {
    %c0_i32 = arith.constant 0 : i32
    %c0_i32_0 = arith.constant 0 : i32
    %c0_i32_1 = arith.constant 0 : i32
    return %c0_i32, %c0_i32_0 : i32, i32
  }
  func.func @transform_6(%arg0: i32, %arg1: i32) -> (i32, i32) {
    %c0_i32 = arith.constant 0 : i32
    %c0_i32_0 = arith.constant 0 : i32
    %c0_i32_1 = arith.constant 0 : i32
    return %c0_i32, %c0_i32_0 : i32, i32
  }
  func.func @transform_7(%arg0: i32, %arg1: i32) -> (i32, i32) {
    %c0_i32 = arith.constant 0 : i32
    %c0_i32_0 = arith.constant 0 : i32
    %c0_i32_1 = arith.constant 0 : i32
    return %c0_i32, %c0_i32_0 : i32, i32
  }
  func.func @transform_8(%arg0: i32, %arg1: i32) -> (i32, i32) {
    %c0_i32 = arith.constant 0 : i32
    %c0_i32_0 = arith.constant 0 : i32
    %c0_i32_1 = arith.constant 0 : i32
    return %c0_i32, %c0_i32_0 : i32, i32
  }
  func.func @transform_9(%arg0: i32, %arg1: i32) -> (i32, i32, i32) {
    %c0_i32 = arith.constant 0 : i32
    %c0_i32_0 = arith.constant 0 : i32
    return %arg0, %arg1, %c0_i32 : i32, i32, i32
  }
}

</mosaic_0001>

<llo_original>
// kernel: tpu_custom_call.1
$region0: #{tpu_custom_call.1}
  #allocation0 [shape = 'u32[]', space=smem, size = 0x4, offset = 0x4, fixed_abs, tag = 'smem constant byte address 0x4 - core index']
  #allocation1 [shape = 'u32[144,128]{1,0:T(1,128)}', space=vmem, size = 0x12000, scoped, tag = 'internal scratch']
  %s0 = inlined_call_operand.hbm [shape: bf16[2,200,128], index: 0, kind: input, shape index: {}]
  %s1 = inlined_call_operand.hbm [shape: bf16[2,200,128], index: 1, kind: input, shape index: {}]
  %s2 = inlined_call_operand.hbm [shape: bf16[2,200,128], index: 2, kind: input, shape index: {}]
  %s3 = inlined_call_operand.hbm [shape: bf16[128,128], index: 3, kind: input, shape index: {}]
  %s4 = inlined_call_operand.vmem [shape: f32[1,128], index: 4, kind: input, shape index: {}]
  %s5 = inlined_call_operand.hbm [shape: bf16[384,128], index: 5, kind: input, shape index: {}]
  %s6 = inlined_call_operand.vmem [shape: f32[1,128], index: 6, kind: input, shape index: {}]
  %s7 = inlined_call_operand.hbm [shape: bf16[128,128], index: 7, kind: input, shape index: {}]
  %s8 = inlined_call_operand.vmem [shape: f32[1,128], index: 8, kind: input, shape index: {}]
  %s9 = inlined_call_operand.hbm [shape: f32[2,200,128], index: 9, kind: output, shape index: {}]
  %s10 = sld [smem:[#allocation0]]
  $region93: #{tpu_custom_call.1} parent=0
    _
  %s12 = ssub.s32 1, %s10
  %s13 = scalar_select 0, %s12, %s10
  $region1: #{tpu_custom_call.1} parent=0
    #allocation2 [shape = 'u8[102400]{0}', space=vmem, size = 0x19000, scoped, tag = 'input window, operand 0']
    #allocation3 [shape = 's32[2]{0}', space=sflag, size = 0x8, scoped, tag = 'scoped memory for tpu_custom_call.1']
    #allocation4 [shape = 's32[2]{0}', space=sflag, size = 0x8, scoped, tag = 'scoped memory for tpu_custom_call.1']
    #allocation5 [shape = 'u8[4096]{0}', space=vmem, size = 0x1000, scoped, tag = 'input window, operand 1']
    #allocation6 [shape = 's32[2]{0}', space=sflag, size = 0x8, scoped, tag = 'scoped memory for tpu_custom_call.1']
    #allocation7 [shape = 'u8[4096]{0}', space=vmem, size = 0x1000, scoped, tag = 'input window, operand 2']
    #allocation8 [shape = 'u8[32768]{0}', space=vmem, size = 0x8000, scoped, tag = 'input window, operand 3, single buffered']
    #allocation9 [shape = 's32[1]{0}', space=sflag, size = 0x4, scoped, tag = 'scoped memory for tpu_custom_call.1']
    #allocation10 [shape = 'u8[98304]{0}', space=vmem, size = 0x18000, scoped, tag = 'input window, operand 5, single buffered']
    #allocation11 [shape = 'u8[32768]{0}', space=vmem, size = 0x8000, scoped, tag = 'input window, operand 7, single buffered']
    #allocation12 [shape = 's32[1]{0}', space=sflag, size = 0x4, scoped, tag = 'scoped memory for tpu_custom_call.1']
    #allocation13 [shape = 'u8[204800]{0}', space=vmem, size = 0x32000, scoped, tag = 'output window, operand 0']
    %14 = vsyncpa [#allocation3], 0
    %s15 = scalar_lea.sflag [#allocation3], 1
    %16 = vsyncpa %s15, 0
    %17 = vsyncpa [#allocation6], 0
    %s18 = scalar_lea.sflag [#allocation6], 1
    %19 = vsyncpa %s18, 0
    %20 = vsyncpa [#allocation9], 0
    %21 = vsyncpa [#allocation12], 0
    %22 = vsyncpa [#allocation4], 0
    %s23 = scalar_lea.sflag [#allocation4], 1
    %24 = vsyncpa %s23, 0
    loop: start=0, step=1, limit=4
    $region2: #{tpu_custom_call.1} parent=1 // loop_pre_header
      _
    $region3: #{tpu_custom_call.1} parent=1 // loop_header
      %s26 = sphi 0, %s30
      %p27 = scmp.ge.s32.totalorder %s26, 4
      %s33 = sphi 0, %s45
      %s34 = sphi 0, %s41
      %s35 = sphi 0, %s33
      %s36 = sphi 0, %s34
      %s37 = sphi 0, %s35
      %s38 = sphi 0, %s36
      %s50 = sphi 0, %s52
      %s53 = sphi 0, %s50
      %s54 = sphi 0, %s53
      %s70 = sphi 0, %s54
      %s86 = sphi 0, %s88
      %s89 = sphi 0, %s86
      %s90 = sphi 0, %s89
      %s106 = sphi 0, %s90
      %s122 = sphi 0, %s124
      %s125 = sphi 0, %s122
      %s126 = sphi 0, %s125
      %s142 = sphi 0, %s126
      %s146 = sphi 0, %s146
      %s148 = sphi 0, %s146
      %s149 = sphi 0, %s148
      %s163 = sphi 0, %s149
      %s167 = sphi 0, %s167
      %s169 = sphi 0, %s167
      %s170 = sphi 0, %s169
      %s184 = sphi 0, %s170
      %s188 = sphi 0, %s188
      %s190 = sphi 0, %s188
      %s191 = sphi 0, %s190
      %s205 = sphi 0, %s191
      %s209 = sphi 0, %s209
      %s211 = sphi 0, %s209
      %s212 = sphi 0, %s211
      %s226 = sphi 0, %s212
      %s230 = sphi 0, %s230
      %s232 = sphi 0, %s230
      %s233 = sphi 0, %s232
      %s247 = sphi 0, %s233
      %s251 = sphi 0, %s251
      %s253 = sphi 0, %s251
      %s254 = sphi 0, %s253
      %s268 = sphi 0, %s254
      %s276 = sphi 0, %s278
      %s279 = sphi 0, %s276
      %s280 = sphi 0, %s279
      %s296 = sphi 0, %s280
    $region4: #{tpu_custom_call.1} parent=1 // loop_header_branch
      %29 = sbr.rel (%p27) target = $region8
    $region5: #{tpu_custom_call.1} parent=1 // loop_body
      %s31 = ssub.s32 %s26, 1
      %s32 = ssub.s32 %s26, 2
      %s39 = sadd.s32 1, %s34
      %p40 = scmp.ge.s32.totalorder %s39, 1
      %s41 = scalar_select %p40, 0, %s39
      %s42 = sadd.s32 1, %s33
      %s43 = scalar_select %p40, %s42, %s33
      %p44 = scmp.ge.s32.totalorder %s43, 2
      %s45 = scalar_select %p44, 0, %s43
      %s46 = ssub.s32 %s33, %s45
      %s47 = ssub.s32 %s34, %s41
      %s48 = sor.u32 %s46, %s47
      %p49 = scmp.eq.s32.totalorder %s48, 0
      %s51 = sadd.s32 %s50, 1
      %s52 = scalar_select %p49, %s50, %s51
      %p55 = pneg %p49
      %p56 = scmp.eq.s32.totalorder %s26, 1
      %p57 = por %p55, %p56
      %p58 = scmp.ne.s32.totalorder %s50, %s53
      %p59 = scmp.eq.s32.totalorder %s26, 0
      %p60 = por %p58, %p59
      %p61 = scmp.ne.s32.totalorder %s50, %s53
      %p62 = scmp.eq.s32.totalorder %s31, 1
      %p63 = por %p61, %p62
      %p64 = scmp.ne.s32.totalorder %s53, %s54
      %p65 = scmp.eq.s32.totalorder %s31, 0
      %p66 = por %p64, %p65
      %p67 = scmp.ne.s32.totalorder %s53, %s54
      %p68 = scmp.eq.s32.totalorder %s32, 1
      %p69 = por %p67, %p68
      %p71 = scmp.ne.s32.totalorder %s54, %s70
      %p72 = scmp.eq.s32.totalorder %s32, 0
      %p73 = por %p71, %p72
      %s74 = smul.u32 %s34, 25
      %s75 = ssub.s32 %s74, 1
      %p76 = scmp.gt.s32.totalorder %s75, 0
      %s77 = scalar_select %p76, %s75, 0
      %s78 = smul.u32 %s41, 25
      %s79 = ssub.s32 %s78, 1
      %p80 = scmp.gt.s32.totalorder %s79, 0
      %s81 = scalar_select %p80, %s79, 0
      %s82 = ssub.s32 %s33, %s45
      %s83 = ssub.s32 %s77, %s81
      %s84 = sor.u32 %s82, %s83
      %p85 = scmp.eq.s32.totalorder %s84, 0
      %s87 = sadd.s32 %s86, 1
      %s88 = scalar_select %p85, %s86, %s87
      %p91 = pneg %p85
      %p92 = scmp.eq.s32.totalorder %s26, 1
      %p93 = por %p91, %p92
      %p94 = scmp.ne.s32.totalorder %s86, %s89
      %p95 = scmp.eq.s32.totalorder %s26, 0
      %p96 = por %p94, %p95
      %p97 = scmp.ne.s32.totalorder %s86, %s89
      %p98 = scmp.eq.s32.totalorder %s31, 1
      %p99 = por %p97, %p98
      %p100 = scmp.ne.s32.totalorder %s89, %s90
      %p101 = scmp.eq.s32.totalorder %s31, 0
      %p102 = por %p100, %p101
      %p103 = scmp.ne.s32.totalorder %s89, %s90
      %p104 = scmp.eq.s32.totalorder %s32, 1
      %p105 = por %p103, %p104
      %p107 = scmp.ne.s32.totalorder %s90, %s106
      %p108 = scmp.eq.s32.totalorder %s32, 0
      %p109 = por %p107, %p108
      %s110 = sadd.s32 %s34, 1
      %s111 = smul.u32 %s110, 25
      %p112 = scmp.lt.s32.totalorder %s111, 24
      %s113 = scalar_select %p112, %s111, 24
      %s114 = sadd.s32 %s41, 1
      %s115 = smul.u32 %s114, 25
      %p116 = scmp.lt.s32.totalorder %s115, 24
      %s117 = scalar_select %p116, %s115, 24
      %s118 = ssub.s32 %s33, %s45
      %s119 = ssub.s32 %s113, %s117
      %s120 = sor.u32 %s118, %s119
      %p121 = scmp.eq.s32.totalorder %s120, 0
      %s123 = sadd.s32 %s122, 1
      %s124 = scalar_select %p121, %s122, %s123
      %p127 = pneg %p121
      %p128 = scmp.eq.s32.totalorder %s26, 1
      %p129 = por %p127, %p128
      %p130 = scmp.ne.s32.totalorder %s122, %s125
      %p131 = scmp.eq.s32.totalorder %s26, 0
      %p132 = por %p130, %p131
      %p133 = scmp.ne.s32.totalorder %s122, %s125
      %p134 = scmp.eq.s32.totalorder %s31, 1
      %p135 = por %p133, %p134
      %p136 = scmp.ne.s32.totalorder %s125, %s126
      %p137 = scmp.eq.s32.totalorder %s31, 0
      %p138 = por %p136, %p137
      %p139 = scmp.ne.s32.totalorder %s125, %s126
      %p140 = scmp.eq.s32.totalorder %s32, 1
      %p141 = por %p139, %p140
      %p143 = scmp.ne.s32.totalorder %s126, %s142
      %p144 = scmp.eq.s32.totalorder %s32, 0
      %p145 = por %p143, %p144
      %s147 = sadd.s32 %s146, 1
      %p150 = scmp.eq.s32.totalorder %s26, 1
      %p151 = scmp.ne.s32.totalorder %s146, %s148
      %p152 = scmp.eq.s32.totalorder %s26, 0
      %p153 = por %p151, %p152
      %p154 = scmp.ne.s32.totalorder %s146, %s148
      %p155 = scmp.eq.s32.totalorder %s31, 1
      %p156 = por %p154, %p155
      %p157 = scmp.ne.s32.totalorder %s148, %s149
      %p158 = scmp.eq.s32.totalorder %s31, 0
      %p159 = por %p157, %p158
      %p160 = scmp.ne.s32.totalorder %s148, %s149
      %p161 = scmp.eq.s32.totalorder %s32, 1
      %p162 = por %p160, %p161
      %p164 = scmp.ne.s32.totalorder %s149, %s163
      %p165 = scmp.eq.s32.totalorder %s32, 0
      %p166 = por %p164, %p165
      %s168 = sadd.s32 %s167, 1
      %p171 = scmp.eq.s32.totalorder %s26, 1
      %p172 = scmp.ne.s32.totalorder %s167, %s169
      %p173 = scmp.eq.s32.totalorder %s26, 0
      %p174 = por %p172, %p173
      %p175 = scmp.ne.s32.totalorder %s167, %s169
      %p176 = scmp.eq.s32.totalorder %s31, 1
      %p177 = por %p175, %p176
      %p178 = scmp.ne.s32.totalorder %s169, %s170
      %p179 = scmp.eq.s32.totalorder %s31, 0
      %p180 = por %p178, %p179
      %p181 = scmp.ne.s32.totalorder %s169, %s170
      %p182 = scmp.eq.s32.totalorder %s32, 1
      %p183 = por %p181, %p182
      %p185 = scmp.ne.s32.totalorder %s170, %s184
      %p186 = scmp.eq.s32.totalorder %s32, 0
      %p187 = por %p185, %p186
      %s189 = sadd.s32 %s188, 1
      %p192 = scmp.eq.s32.totalorder %s26, 1
      %p193 = scmp.ne.s32.totalorder %s188, %s190
      %p194 = scmp.eq.s32.totalorder %s26, 0
      %p195 = por %p193, %p194
      %p196 = scmp.ne.s32.totalorder %s188, %s190
      %p197 = scmp.eq.s32.totalorder %s31, 1
      %p198 = por %p196, %p197
      %p199 = scmp.ne.s32.totalorder %s190, %s191
      %p200 = scmp.eq.s32.totalorder %s31, 0
      %p201 = por %p199, %p200
      %p202 = scmp.ne.s32.totalorder %s190, %s191
      %p203 = scmp.eq.s32.totalorder %s32, 1
      %p204 = por %p202, %p203
      %p206 = scmp.ne.s32.totalorder %s191, %s205
      %p207 = scmp.eq.s32.totalorder %s32, 0
      %p208 = por %p206, %p207
      %s210 = sadd.s32 %s209, 1
      %p213 = scmp.eq.s32.totalorder %s26, 1
      %p214 = scmp.ne.s32.totalorder %s209, %s211
      %p215 = scmp.eq.s32.totalorder %s26, 0
      %p216 = por %p214, %p215
      %p217 = scmp.ne.s32.totalorder %s209, %s211
      %p218 = scmp.eq.s32.totalorder %s31, 1
      %p219 = por %p217, %p218
      %p220 = scmp.ne.s32.totalorder %s211, %s212
      %p221 = scmp.eq.s32.totalorder %s31, 0
      %p222 = por %p220, %p221
      %p223 = scmp.ne.s32.totalorder %s211, %s212
      %p224 = scmp.eq.s32.totalorder %s32, 1
      %p225 = por %p223, %p224
      %p227 = scmp.ne.s32.totalorder %s212, %s226
      %p228 = scmp.eq.s32.totalorder %s32, 0
      %p229 = por %p227, %p228
      %s231 = sadd.s32 %s230, 1
      %p234 = scmp.eq.s32.totalorder %s26, 1
      %p235 = scmp.ne.s32.totalorder %s230, %s232
      %p236 = scmp.eq.s32.totalorder %s26, 0
      %p237 = por %p235, %p236
      %p238 = scmp.ne.s32.totalorder %s230, %s232
      %p239 = scmp.eq.s32.totalorder %s31, 1
      %p240 = por %p238, %p239
      %p241 = scmp.ne.s32.totalorder %s232, %s233
      %p242 = scmp.eq.s32.totalorder %s31, 0
      %p243 = por %p241, %p242
      %p244 = scmp.ne.s32.totalorder %s232, %s233
      %p245 = scmp.eq.s32.totalorder %s32, 1
      %p246 = por %p244, %p245
      %p248 = scmp.ne.s32.totalorder %s233, %s247
      %p249 = scmp.eq.s32.totalorder %s32, 0
      %p250 = por %p248, %p249
      %s252 = sadd.s32 %s251, 1
      %p255 = scmp.eq.s32.totalorder %s26, 1
      %p256 = scmp.ne.s32.totalorder %s251, %s253
      %p257 = scmp.eq.s32.totalorder %s26, 0
      %p258 = por %p256, %p257
      %p259 = scmp.ne.s32.totalorder %s251, %s253
      %p260 = scmp.eq.s32.totalorder %s31, 1
      %p261 = por %p259, %p260
      %p262 = scmp.ne.s32.totalorder %s253, %s254
      %p263 = scmp.eq.s32.totalorder %s31, 0
      %p264 = por %p262, %p263
      %p265 = scmp.ne.s32.totalorder %s253, %s254
      %p266 = scmp.eq.s32.totalorder %s32, 1
      %p267 = por %p265, %p266
      %p269 = scmp.ne.s32.totalorder %s254, %s268
      %p270 = scmp.eq.s32.totalorder %s32, 0
      %p271 = por %p269, %p270
      %s272 = ssub.s32 %s33, %s45
      %s273 = ssub.s32 %s34, %s41
      %s274 = sor.u32 %s272, %s273
      %p275 = scmp.eq.s32.totalorder %s274, 0
      %s277 = sadd.s32 %s276, 1
      %s278 = scalar_select %p275, %s276, %s277
      %p281 = pneg %p275
      %p282 = scmp.eq.s32.totalorder %s26, 1
      %p283 = por %p281, %p282
      %p284 = scmp.ne.s32.totalorder %s276, %s279
      %p285 = scmp.eq.s32.totalorder %s26, 0
      %p286 = por %p284, %p285
      %p287 = scmp.ne.s32.totalorder %s276, %s279
      %p288 = scmp.eq.s32.totalorder %s31, 1
      %p289 = por %p287, %p288
      %p290 = scmp.ne.s32.totalorder %s279, %s280
      %p291 = scmp.eq.s32.totalorder %s31, 0
      %p292 = por %p290, %p291
      %p293 = scmp.ne.s32.totalorder %s279, %s280
      %p294 = scmp.eq.s32.totalorder %s32, 1
      %p295 = por %p293, %p294
      %p297 = scmp.ne.s32.totalorder %s280, %s296
      %p298 = scmp.eq.s32.totalorder %s32, 0
      %p299 = por %p297, %p298
      %p300 = scmp.le.s32.totalorder 1, %s26
      %p301 = scmp.lt.s32.totalorder %s26, 3
      %p302 = pnand %p300, %p301
      %p303 = pneg %p302
      // Predicated region
      $region9: #{tpu_custom_call.1} parent=5 // pred_check
        _
      $region10: #{tpu_custom_call.1} parent=5 // pred_check_branch
        %305 = sbr.rel (%p302) target = $region12
      $region11: #{tpu_custom_call.1} parent=5 // pred_region
        %s306 = ssub.s32 %s26, 1
        // Predicated region
        $region13: #{tpu_custom_call.1} parent=11 // pred_check
          %p307 = pneg %p159
        $region14: #{tpu_custom_call.1} parent=11 // pred_check_branch
          %309 = sbr.rel (%p307) target = $region16
        $region15: #{tpu_custom_call.1} parent=11 // pred_region
          %s311 = ssub.s32 1024, 1024
          %312 = vsyncadd [#allocation9], %s311
          %s313 = sshll.u32 [#allocation8], 4
          %s314 = int_to_ptr.vmem [resolvable:$true] %s313
          %319 = dma.hbm_to_vmem [thread:$0]  %s3, 1024, %s314, [#allocation9], 64, 64, 4
        $region16: #{tpu_custom_call.1} parent=11 // pred_fallthru
          _
        // Predicated region
        $region17: #{tpu_custom_call.1} parent=11 // pred_check
          %p320 = pneg %p180
        $region18: #{tpu_custom_call.1} parent=11 // pred_check_branch
          %322 = sbr.rel (%p320) target = $region20
        $region19: #{tpu_custom_call.1} parent=11 // pred_region
          _
        $region20: #{tpu_custom_call.1} parent=11 // pred_fallthru
          _
        // Predicated region
        $region21: #{tpu_custom_call.1} parent=11 // pred_check
          %p323 = pneg %p201
        $region22: #{tpu_custom_call.1} parent=11 // pred_check_branch
          %325 = sbr.rel (%p323) target = $region24
        $region23: #{tpu_custom_call.1} parent=11 // pred_region
          %s327 = ssub.s32 3072, 3072
          %328 = vsyncadd [#allocation9], %s327
          %s329 = sshll.u32 [#allocation10], 4
          %s330 = int_to_ptr.vmem [resolvable:$true] %s329
          %335 = dma.hbm_to_vmem [thread:$0]  %s5, 3072, %s330, [#allocation9], 64, 64, 4
        $region24: #{tpu_custom_call.1} parent=11 // pred_fallthru
          _
        // Predicated region
        $region25: #{tpu_custom_call.1} parent=11 // pred_check
          %p336 = pneg %p222
        $region26: #{tpu_custom_call.1} parent=11 // pred_check_branch
          %338 = sbr.rel (%p336) target = $region28
        $region27: #{tpu_custom_call.1} parent=11 // pred_region
          _
        $region28: #{tpu_custom_call.1} parent=11 // pred_fallthru
          _
        // Predicated region
        $region29: #{tpu_custom_call.1} parent=11 // pred_check
          %p339 = pneg %p243
        $region30: #{tpu_custom_call.1} parent=11 // pred_check_branch
          %341 = sbr.rel (%p339) target = $region32
        $region31: #{tpu_custom_call.1} parent=11 // pred_region
          %s343 = ssub.s32 1024, 1024
          %344 = vsyncadd [#allocation12], %s343
          %s345 = sshll.u32 [#allocation11], 4
          %s346 = int_to_ptr.vmem [resolvable:$true] %s345
          %351 = dma.hbm_to_vmem [thread:$0]  %s7, 1024, %s346, [#allocation12], 64, 64, 4
        $region32: #{tpu_custom_call.1} parent=11 // pred_fallthru
          _
        // Predicated region
        $region33: #{tpu_custom_call.1} parent=11 // pred_check
          %p352 = pneg %p264
        $region34: #{tpu_custom_call.1} parent=11 // pred_check_branch
          %354 = sbr.rel (%p352) target = $region36
        $region35: #{tpu_custom_call.1} parent=11 // pred_region
          _
        $region36: #{tpu_custom_call.1} parent=11 // pred_fallthru
          _
      $region12: #{tpu_custom_call.1} parent=5 // pred_fallthru
        _
      %p355 = scmp.lt.s32.totalorder %s26, 2
      // Predicated region
      $region37: #{tpu_custom_call.1} parent=5 // pred_check
        %p356 = pneg %p355
      $region38: #{tpu_custom_call.1} parent=5 // pred_check_branch
        %358 = sbr.rel (%p356) target = $region40
      $region39: #{tpu_custom_call.1} parent=5 // pred_region
        // Predicated region
        $region41: #{tpu_custom_call.1} parent=39 // pred_check
          %p359 = pneg %p60
        $region42: #{tpu_custom_call.1} parent=39 // pred_check_branch
          %361 = sbr.rel (%p359) target = $region44
        $region43: #{tpu_custom_call.1} parent=39 // pred_region
          %s362 = sand.u32 %s50, 1
          %s363 = scalar_lea.sflag [#allocation3], %s362
          %s364 = sand.u32 %s50, 1
          %s365 = smul.addr %s364, 100
          %s366 = scalar_lea.vmem [#allocation2], %s365
          %s367 = smul.u32 25, %s34
          %s369 = ssub.s32 1600, 1600
          %370 = vsyncadd %s363, %s369
          %s371 = smul.addr %s33, 25
          %s372 = sadd.s32 %s367, %s371
          %s373 = smul.addr %s372, 64
          %s374 = scalar_lea.hbm %s0, %s373
          %s375 = sshll.u32 %s366, 4
          %s376 = int_to_ptr.vmem [resolvable:$true] %s375
          %381 = dma.hbm_to_vmem [thread:$0]  %s374, 1600, %s376, %s363, 64, 64, 4
        $region44: #{tpu_custom_call.1} parent=39 // pred_fallthru
          _
        // Predicated region
        $region45: #{tpu_custom_call.1} parent=39 // pred_check
          %p382 = pneg %p96
        $region46: #{tpu_custom_call.1} parent=39 // pred_check_branch
          %384 = sbr.rel (%p382) target = $region48
        $region47: #{tpu_custom_call.1} parent=39 // pred_region
          %s385 = sand.u32 %s26, 1
          %s386 = scalar_lea.sflag [#allocation6], %s385
          %s387 = sand.u32 %s86, 1
          %s388 = smul.addr %s387, 4
          %s389 = scalar_lea.vmem [#allocation5], %s388
          %s390 = smul.u32 %s34, 25
          %s391 = ssub.s32 %s390, 1
          %p392 = scmp.gt.s32.totalorder %s391, 0
          %s393 = scalar_select %p392, %s391, 0
          %s395 = ssub.s32 64, 64
          %396 = vsyncadd %s386, %s395
          %s397 = smul.addr %s33, 25
          %s398 = sadd.s32 %s393, %s397
          %s399 = smul.addr %s398, 64
          %s400 = scalar_lea.hbm %s1, %s399
          %s402 = sshll.u32 %s389, 4
          %s403 = int_to_ptr.vmem [resolvable:$true] %s402
          %405 = dma.hbm_to_vmem [thread:$0]  %s400, 64, %s403, %s386
        $region48: #{tpu_custom_call.1} parent=39 // pred_fallthru
          _
        // Predicated region
        $region49: #{tpu_custom_call.1} parent=39 // pred_check
          %p406 = pneg %p132
        $region50: #{tpu_custom_call.1} parent=39 // pred_check_branch
          %408 = sbr.rel (%p406) target = $region52
        $region51: #{tpu_custom_call.1} parent=39 // pred_region
          %s409 = sand.u32 %s26, 1
          %s410 = scalar_lea.sflag [#allocation6], %s409
          %s411 = sand.u32 %s122, 1
          %s412 = smul.addr %s411, 4
          %s413 = scalar_lea.vmem [#allocation7], %s412
          %s414 = sadd.s32 %s34, 1
          %s415 = smul.u32 %s414, 25
          %p416 = scmp.lt.s32.totalorder %s415, 24
          %s417 = scalar_select %p416, %s415, 24
          %s419 = ssub.s32 64, 64
          %420 = vsyncadd %s410, %s419
          %s421 = smul.addr %s33, 25
          %s422 = sadd.s32 %s417, %s421
          %s423 = smul.addr %s422, 64
          %s424 = scalar_lea.hbm %s2, %s423
          %s426 = sshll.u32 %s413, 4
          %s427 = int_to_ptr.vmem [resolvable:$true] %s426
          %429 = dma.hbm_to_vmem [thread:$0]  %s424, 64, %s427, %s410
        $region52: #{tpu_custom_call.1} parent=39 // pred_fallthru
          _
      $region40: #{tpu_custom_call.1} parent=5 // pred_fallthru
        _
      %p430 = scmp.le.s32.totalorder 1, %s26
      %p431 = scmp.lt.s32.totalorder %s26, 3
      %p432 = pnand %p430, %p431
      %p433 = pneg %p432
      // Predicated region
      $region53: #{tpu_custom_call.1} parent=5 // pred_check
        _
      $region54: #{tpu_custom_call.1} parent=5 // pred_check_branch
        %435 = sbr.rel (%p432) target = $region56
      $region55: #{tpu_custom_call.1} parent=5 // pred_region
        %s436 = ssub.s32 %s26, 1
        %s437 = sand.u32 %s53, 1
        %s438 = scalar_lea.sflag [#allocation3], %s437
        %s439 = sand.u32 %s53, 1
        %s440 = smul.addr %s439, 100
        %s441 = scalar_lea.vmem [#allocation2], %s440
        // Predicated region
        $region57: #{tpu_custom_call.1} parent=55 // pred_check
          %p442 = pneg %p66
        $region58: #{tpu_custom_call.1} parent=55 // pred_check_branch
          %444 = sbr.rel (%p442) target = $region60
        $region59: #{tpu_custom_call.1} parent=55 // pred_region
          %445 = dma.done %s438, 1600
        $region60: #{tpu_custom_call.1} parent=55 // pred_fallthru
          _
        %s446 = sand.u32 %s31, 1
        %s447 = scalar_lea.sflag [#allocation6], %s446
        %s448 = sand.u32 %s89, 1
        %s449 = smul.addr %s448, 4
        %s450 = scalar_lea.vmem [#allocation5], %s449
        // Predicated region
        $region61: #{tpu_custom_call.1} parent=55 // pred_check
          %p451 = pneg %p102
        $region62: #{tpu_custom_call.1} parent=55 // pred_check_branch
          %453 = sbr.rel (%p451) target = $region64
        $region63: #{tpu_custom_call.1} parent=55 // pred_region
          %454 = dma.done %s447, 64
        $region64: #{tpu_custom_call.1} parent=55 // pred_fallthru
          _
        %s455 = sand.u32 %s31, 1
        %s456 = scalar_lea.sflag [#allocation6], %s455
        %s457 = sand.u32 %s125, 1
        %s458 = smul.addr %s457, 4
        %s459 = scalar_lea.vmem [#allocation7], %s458
        // Predicated region
        $region65: #{tpu_custom_call.1} parent=55 // pred_check
          %p460 = pneg %p138
        $region66: #{tpu_custom_call.1} parent=55 // pred_check_branch
          %462 = sbr.rel (%p460) target = $region68
        $region67: #{tpu_custom_call.1} parent=55 // pred_region
          %463 = dma.done %s456, 64
        $region68: #{tpu_custom_call.1} parent=55 // pred_fallthru
          _
        // Predicated region
        $region69: #{tpu_custom_call.1} parent=55 // pred_check
          %p464 = pneg %p159
        $region70: #{tpu_custom_call.1} parent=55 // pred_check_branch
          %466 = sbr.rel (%p464) target = $region72
        $region71: #{tpu_custom_call.1} parent=55 // pred_region
          %467 = dma.done [#allocation9], 1024
        $region72: #{tpu_custom_call.1} parent=55 // pred_fallthru
          _
        // Predicated region
        $region73: #{tpu_custom_call.1} parent=55 // pred_check
          %p468 = pneg %p201
        $region74: #{tpu_custom_call.1} parent=55 // pred_check_branch
          %470 = sbr.rel (%p468) target = $region76
        $region75: #{tpu_custom_call.1} parent=55 // pred_region
          %471 = dma.done [#allocation9], 3072
        $region76: #{tpu_custom_call.1} parent=55 // pred_fallthru
          _
        // Predicated region
        $region77: #{tpu_custom_call.1} parent=55 // pred_check
          %p472 = pneg %p243
        $region78: #{tpu_custom_call.1} parent=55 // pred_check_branch
          %474 = sbr.rel (%p472) target = $region80
        $region79: #{tpu_custom_call.1} parent=55 // pred_region
          %475 = dma.done [#allocation12], 1024
        $region80: #{tpu_custom_call.1} parent=55 // pred_fallthru
          _
        %s476 = sand.u32 %s53, 1
        %s477 = scalar_lea.sflag [#allocation3], %s476
        %s478 = sand.u32 %s53, 1
        %s479 = smul.addr %s478, 100
        %s480 = scalar_lea.vmem [#allocation2], %s479
        %p481 = pneg %p66
        %p482 = pneg %p63
        %s483 = sand.u32 %s31, 1
        %s484 = scalar_lea.sflag [#allocation6], %s483
        %s485 = sand.u32 %s89, 1
        %s486 = smul.addr %s485, 4
        %s487 = scalar_lea.vmem [#allocation5], %s486
        %p488 = pneg %p102
        %p489 = pneg %p99
        %s490 = sand.u32 %s31, 1
        %s491 = scalar_lea.sflag [#allocation6], %s490
        %s492 = sand.u32 %s125, 1
        %s493 = smul.addr %s492, 4
        %s494 = scalar_lea.vmem [#allocation7], %s493
        %p495 = pneg %p138
        %p496 = pneg %p135
        %p497 = pneg %p159
        %p498 = pneg %p156
        %p499 = pneg %p180
        %p500 = pneg %p177
        %p501 = pneg %p201
        %p502 = pneg %p198
        %p503 = pneg %p222
        %p504 = pneg %p219
        %p505 = pneg %p243
        %p506 = pneg %p240
        %p507 = pneg %p264
        %p508 = pneg %p261
        %p509 = pneg %p292
        %p510 = pneg %p289
        %s511 = sand.u32 %s279, 1
        %s512 = scalar_lea.sflag [#allocation4], %s511
        %s513 = sand.u32 %s279, 1
        %s514 = smul.addr %s513, 200
        %s515 = scalar_lea.vmem [#allocation13], %s514
        %s516 = smul.u32 25, %s36
        %s517 = smul.u32 %s36, 25
        %s518 = ssub.s32 %s517, 1
        %p519 = scmp.gt.s32.totalorder %s518, 0
        %s520 = scalar_select %p519, %s518, 0
        %s521 = sadd.s32 %s36, 1
        %s522 = smul.u32 %s521, 25
        %p523 = scmp.lt.s32.totalorder %s522, 24
        %s524 = scalar_select %p523, %s522, 24
        %s525 = smul.u32 25, %s36
        %s527 = smul.u32 %s36, 200
        %v528 = vld [vmem:[%s441] sm:$0xf]
        %v529 = vld [vmem:[%s441 + $0x4] sm:$0xf]
        %v530 = vld [vmem:[%s441 + $0x8] sm:$0xf]
        %v531 = vld [vmem:[%s441 + $0xc] sm:$0xf]
        %v532 = vld [vmem:[%s441 + $0x10] sm:$0xf]
        %v533 = vld [vmem:[%s441 + $0x14] sm:$0xf]
        %v534 = vld [vmem:[%s441 + $0x18] sm:$0xf]
        %v535 = vld [vmem:[%s441 + $0x1c] sm:$0xf]
        %v536 = vld [vmem:[%s441 + $0x20] sm:$0xf]
        %v537 = vld [vmem:[%s441 + $0x24] sm:$0xf]
        %v538 = vld [vmem:[%s441 + $0x28] sm:$0xf]
        %v539 = vld [vmem:[%s441 + $0x2c] sm:$0xf]
        %v540 = vld [vmem:[%s441 + $0x30] sm:$0xf]
        %v541 = vld [vmem:[%s441 + $0x34] sm:$0xf]
        %v542 = vld [vmem:[%s441 + $0x38] sm:$0xf]
        %v543 = vld [vmem:[%s441 + $0x3c] sm:$0xf]
        %v544 = vld [vmem:[%s441 + $0x40] sm:$0xf]
        %v545 = vld [vmem:[%s441 + $0x44] sm:$0xf]
        %v546 = vld [vmem:[%s441 + $0x48] sm:$0xf]
        %v547 = vld [vmem:[%s441 + $0x4c] sm:$0xf]
        %v548 = vld [vmem:[%s441 + $0x50] sm:$0xf]
        %v549 = vld [vmem:[%s441 + $0x54] sm:$0xf]
        %v550 = vld [vmem:[%s441 + $0x58] sm:$0xf]
        %v551 = vld [vmem:[%s441 + $0x5c] sm:$0xf]
        %v552 = vld [vmem:[%s441 + $0x60] sm:$0xf]
        %v553 = vld [vmem:[#allocation8] sm:$0xf]
        %v554 = vld [vmem:[#allocation8 + $0x4] sm:$0xf]
        %v555 = vld [vmem:[#allocation8 + $0x8] sm:$0xf]
        %v556 = vld [vmem:[#allocation8 + $0xc] sm:$0xf]
        %v557 = vld [vmem:[#allocation8 + $0x10] sm:$0xf]
        %v558 = vld [vmem:[#allocation8 + $0x14] sm:$0xf]
        %v559 = vld [vmem:[#allocation8 + $0x18] sm:$0xf]
        %v560 = vld [vmem:[#allocation8 + $0x1c] sm:$0xf]
        %v561 = vld [vmem:[#allocation8 + $0x20] sm:$0xf]
        %v562 = vld [vmem:[#allocation8 + $0x24] sm:$0xf]
        %v563 = vld [vmem:[#allocation8 + $0x28] sm:$0xf]
        %v564 = vld [vmem:[#allocation8 + $0x2c] sm:$0xf]
        %v565 = vld [vmem:[#allocation8 + $0x30] sm:$0xf]
        %v566 = vld [vmem:[#allocation8 + $0x34] sm:$0xf]
        %v567 = vld [vmem:[#allocation8 + $0x38] sm:$0xf]
        %v568 = vld [vmem:[#allocation8 + $0x3c] sm:$0xf]
        %v569 = vld [vmem:[%s4] sm:$0x1]
        %v571 = vlaneseq
        %v572 = vshrl.u32 %v571, 7
        %v573 = vsub.s32 0, %v572
        %v574 = vrot.slane %v569, %v573
        %v601 = vunpack.c.l.b16 %v528
        %v602 = vunpack.c.l.b16 %v529
        %v603 = vunpack.c.l.b16 %v530
        %v604 = vunpack.c.l.b16 %v531
        %v605 = vunpack.c.l.b16 %v532
        %v606 = vunpack.c.l.b16 %v533
        %v607 = vunpack.c.l.b16 %v534
        %v608 = vunpack.c.l.b16 %v535
        %v609 = vunpack.c.l.b16 %v536
        %v610 = vunpack.c.l.b16 %v537
        %v611 = vunpack.c.l.b16 %v538
        %v612 = vunpack.c.l.b16 %v539
        %v613 = vunpack.c.l.b16 %v540
        %v614 = vunpack.c.l.b16 %v541
        %v615 = vunpack.c.l.b16 %v542
        %v616 = vunpack.c.l.b16 %v543
        %v617 = vunpack.c.l.b16 %v544
        %v618 = vunpack.c.l.b16 %v545
        %v619 = vunpack.c.l.b16 %v546
        %v620 = vunpack.c.l.b16 %v547
        %v621 = vunpack.c.l.b16 %v548
        %v622 = vunpack.c.l.b16 %v549
        %v623 = vunpack.c.l.b16 %v550
        %v624 = vunpack.c.l.b16 %v551
        %v625 = vunpack.c.l.b16 %v552
        %v626 = vpack.c.b16 %v602, %v601
        %v627 = vpack.c.b16 %v604, %v603
        %v628 = vpack.c.b16 %v606, %v605
        %v629 = vpack.c.b16 %v608, %v607
        %v630 = vpack.c.b16 %v610, %v609
        %v631 = vpack.c.b16 %v612, %v611
        %v632 = vpack.c.b16 %v614, %v613
        %v633 = vpack.c.b16 %v616, %v615
        %v634 = vpack.c.b16 %v618, %v617
        %v635 = vpack.c.b16 %v620, %v619
        %v636 = vpack.c.b16 %v622, %v621
        %v637 = vpack.c.b16 %v624, %v623
        %v638 = vpack.c.b16 %v625, %v625
        %v668 = vunpack.c.l.b16 %v553
        %v669 = vunpack.c.l.b16 %v554
        %v670 = vunpack.c.l.b16 %v555
        %v671 = vunpack.c.l.b16 %v556
        %v672 = vunpack.c.l.b16 %v557
        %v673 = vunpack.c.l.b16 %v558
        %v674 = vunpack.c.l.b16 %v559
        %v675 = vunpack.c.l.b16 %v560
        %v676 = vunpack.c.l.b16 %v561
        %v677 = vunpack.c.l.b16 %v562
        %v678 = vunpack.c.l.b16 %v563
        %v679 = vunpack.c.l.b16 %v564
        %v680 = vunpack.c.l.b16 %v565
        %v681 = vunpack.c.l.b16 %v566
        %v682 = vunpack.c.l.b16 %v567
        %v683 = vunpack.c.l.b16 %v568
        %v684 = vpack.c.b16 %v669, %v668
        %v685 = vpack.c.b16 %v671, %v670
        %v686 = vpack.c.b16 %v673, %v672
        %v687 = vpack.c.b16 %v675, %v674
        %v688 = vpack.c.b16 %v677, %v676
        %v689 = vpack.c.b16 %v679, %v678
        %v690 = vpack.c.b16 %v681, %v680
        %v691 = vpack.c.b16 %v683, %v682
        %700 = vmatprep.subr.bf16.mxu0 0
        %701 = vmatpush1.bf16.msra.mxu0 %v684
        %702 = vmatprep.subr.bf16.mxu0 0
        %703 = vmatpush1.bf16.msra.mxu0 %v685
        %704 = vmatprep.subr.bf16.mxu0 0
        %705 = vmatpush1.bf16.msra.mxu0 %v686
        %706 = vmatprep.subr.bf16.mxu0 0
        %707 = vmatpush1.bf16.msra.mxu0 %v687
        %708 = vmatprep.subr.bf16.mxu0 0
        %709 = vmatpush1.bf16.msra.mxu0 %v688
        %710 = vmatprep.subr.bf16.mxu0 0
        %711 = vmatpush1.bf16.msra.mxu0 %v689
        %712 = vmatprep.subr.bf16.mxu0 0
        %713 = vmatpush1.bf16.msra.mxu0 %v690
        %714 = vmatprep.subr.bf16.mxu0 0
        %715 = vmatpush1.bf16.msra.mxu0 %v691
        %716 = vmatprep.subr.bf16.mxu0 0
        %717 = vmatpush1.bf16.msra.mxu0 0
        %718 = vmatprep.subr.bf16.mxu0 0
        %719 = vmatpush1.bf16.msra.mxu0 0
        %720 = vmatprep.subr.bf16.mxu0 0
        %721 = vmatpush1.bf16.msra.mxu0 0
        %722 = vmatprep.subr.bf16.mxu0 0
        %723 = vmatpush1.bf16.msra.mxu0 0
        %724 = vmatprep.subr.bf16.mxu0 0
        %725 = vmatpush1.bf16.msra.mxu0 0
        %726 = vmatprep.subr.bf16.mxu0 0
        %727 = vmatpush1.bf16.msra.mxu0 0
        %728 = vmatprep.subr.bf16.mxu0 0
        %729 = vmatpush1.bf16.msra.mxu0 0
        %730 = vmatprep.subr.bf16.mxu0 0
        %731 = vmatpush1.bf16.msra.mxu0 0
        %732 = vmatprep.mubr.bf16.mxu0 0
        %733 = vmatmul.mubr.bf16.gmra.mrb[0].mxu0 %v626
        %v734 = vpop.f32.mrb[0].mxu0
        %v735 = vadd.f32 %v574, %v734
        %v736 = vpop.f32.mrb[0].mxu0
        %v737 = vpop.f32.mrb[0].mxu0
        %v738 = vadd.f32 %v574, %v737
        %v739 = vpop.f32.mrb[0].mxu0
        %740 = vmatprep.mubr.bf16.mxu0 0
        %741 = vmatmul.mubr.bf16.gmra.mrb[0].mxu0 %v627
        %v742 = vpop.f32.mrb[0].mxu0
        %v743 = vadd.f32 %v574, %v742
        %v744 = vpop.f32.mrb[0].mxu0
        %v745 = vpop.f32.mrb[0].mxu0
        %v746 = vadd.f32 %v574, %v745
        %v747 = vpop.f32.mrb[0].mxu0
        %748 = vmatprep.mubr.bf16.mxu0 0
        %749 = vmatmul.mubr.bf16.gmra.mrb[0].mxu0 %v628
        %v750 = vpop.f32.mrb[0].mxu0
        %v751 = vadd.f32 %v574, %v750
        %v752 = vpop.f32.mrb[0].mxu0
        %v753 = vpop.f32.mrb[0].mxu0
        %v754 = vadd.f32 %v574, %v753
        %v755 = vpop.f32.mrb[0].mxu0
        %756 = vmatprep.mubr.bf16.mxu0 0
        %757 = vmatmul.mubr.bf16.gmra.mrb[0].mxu0 %v629
        %v758 = vpop.f32.mrb[0].mxu0
        %v759 = vadd.f32 %v574, %v758
        %v760 = vpop.f32.mrb[0].mxu0
        %v761 = vpop.f32.mrb[0].mxu0
        %v762 = vadd.f32 %v574, %v761
        %v763 = vpop.f32.mrb[0].mxu0
        %764 = vmatprep.mubr.bf16.mxu0 0
        %765 = vmatmul.mubr.bf16.gmra.mrb[0].mxu0 %v630
        %v766 = vpop.f32.mrb[0].mxu0
        %v767 = vadd.f32 %v574, %v766
        %v768 = vpop.f32.mrb[0].mxu0
        %v769 = vpop.f32.mrb[0].mxu0
        %v770 = vadd.f32 %v574, %v769
        %v771 = vpop.f32.mrb[0].mxu0
        %772 = vmatprep.mubr.bf16.mxu0 0
        %773 = vmatmul.mubr.bf16.gmra.mrb[0].mxu0 %v631
        %v774 = vpop.f32.mrb[0].mxu0
        %v775 = vadd.f32 %v574, %v774
        %v776 = vpop.f32.mrb[0].mxu0
        %v777 = vpop.f32.mrb[0].mxu0
        %v778 = vadd.f32 %v574, %v777
        %v779 = vpop.f32.mrb[0].mxu0
        %780 = vmatprep.mubr.bf16.mxu0 0
        %781 = vmatmul.mubr.bf16.gmra.mrb[0].mxu0 %v632
        %v782 = vpop.f32.mrb[0].mxu0
        %v783 = vadd.f32 %v574, %v782
        %v784 = vpop.f32.mrb[0].mxu0
        %v785 = vpop.f32.mrb[0].mxu0
        %v786 = vadd.f32 %v574, %v785
        %v787 = vpop.f32.mrb[0].mxu0
        %788 = vmatprep.mubr.bf16.mxu0 0
        %789 = vmatmul.mubr.bf16.gmra.mrb[0].mxu0 %v633
        %v790 = vpop.f32.mrb[0].mxu0
        %v791 = vadd.f32 %v574, %v790
        %v792 = vpop.f32.mrb[0].mxu0
        %v793 = vpop.f32.mrb[0].mxu0
        %v794 = vadd.f32 %v574, %v793
        %v795 = vpop.f32.mrb[0].mxu0
        %796 = vmatprep.mubr.bf16.mxu0 0
        %797 = vmatmul.mubr.bf16.gmra.mrb[0].mxu0 %v634
        %v798 = vpop.f32.mrb[0].mxu0
        %v799 = vadd.f32 %v574, %v798
        %v800 = vpop.f32.mrb[0].mxu0
        %v801 = vpop.f32.mrb[0].mxu0
        %v802 = vadd.f32 %v574, %v801
        %v803 = vpop.f32.mrb[0].mxu0
        %804 = vmatprep.mubr.bf16.mxu0 0
        %805 = vmatmul.mubr.bf16.gmra.mrb[0].mxu0 %v635
        %v806 = vpop.f32.mrb[0].mxu0
        %v807 = vadd.f32 %v574, %v806
        %v808 = vpop.f32.mrb[0].mxu0
        %v809 = vpop.f32.mrb[0].mxu0
        %v810 = vadd.f32 %v574, %v809
        %v811 = vpop.f32.mrb[0].mxu0
        %812 = vmatprep.mubr.bf16.mxu0 0
        %813 = vmatmul.mubr.bf16.gmra.mrb[0].mxu0 %v636
        %v814 = vpop.f32.mrb[0].mxu0
        %v815 = vadd.f32 %v574, %v814
        %v816 = vpop.f32.mrb[0].mxu0
        %v817 = vpop.f32.mrb[0].mxu0
        %v818 = vadd.f32 %v574, %v817
        %v819 = vpop.f32.mrb[0].mxu0
        %820 = vmatprep.mubr.bf16.mxu0 0
        %821 = vmatmul.mubr.bf16.gmra.mrb[0].mxu0 %v637
        %v822 = vpop.f32.mrb[0].mxu0
        %v823 = vadd.f32 %v574, %v822
        %v824 = vpop.f32.mrb[0].mxu0
        %v825 = vpop.f32.mrb[0].mxu0
        %v826 = vadd.f32 %v574, %v825
        %v827 = vpop.f32.mrb[0].mxu0
        %828 = vmatprep.mubr.bf16.mxu0 0
        %829 = vmatmul.mubr.bf16.gmra.mrb[0].mxu0 %v638
        %v830 = vpop.f32.mrb[0].mxu0
        %v831 = vadd.f32 %v574, %v830
        %v832 = vpop.f32.mrb[0].mxu0
        %v833 = vpop.f32.mrb[0].mxu0
        %v834 = vpop.f32.mrb[0].mxu0
        %835 = vdwg.mxu0
        %v836 = vmax.f32 %v735, 0.0
        %v837 = vmax.f32 %v738, 0.0
        %v838 = vmax.f32 %v743, 0.0
        %v839 = vmax.f32 %v746, 0.0
        %v840 = vmax.f32 %v751, 0.0
        %v841 = vmax.f32 %v754, 0.0
        %v842 = vmax.f32 %v759, 0.0
        %v843 = vmax.f32 %v762, 0.0
        %v844 = vmax.f32 %v767, 0.0
        %v845 = vmax.f32 %v770, 0.0
        %v846 = vmax.f32 %v775, 0.0
        %v847 = vmax.f32 %v778, 0.0
        %v848 = vmax.f32 %v783, 0.0
        %v849 = vmax.f32 %v786, 0.0
        %v850 = vmax.f32 %v791, 0.0
        %v851 = vmax.f32 %v794, 0.0
        %v852 = vmax.f32 %v799, 0.0
        %v853 = vmax.f32 %v802, 0.0
        %v854 = vmax.f32 %v807, 0.0
        %v855 = vmax.f32 %v810, 0.0
        %v856 = vmax.f32 %v815, 0.0
        %v857 = vmax.f32 %v818, 0.0
        %v858 = vmax.f32 %v823, 0.0
        %v859 = vmax.f32 %v826, 0.0
        %v860 = vmax.f32 %v831, 0.0
        %v861 = vlaneseq
        %v862 = vshrl.u32 %v861, 7
        %v863 = vadd.s32 %v862, 8
        %v864 = vadd.s32 %v862, 16
        %v865 = vadd.s32 %v862, 24
        %v866 = vadd.s32 %v862, 32
        %v867 = vadd.s32 %v862, 40
        %v868 = vadd.s32 %v862, 48
        %v869 = vadd.s32 %v862, 56
        %v870 = vadd.s32 %v862, 64
        %v871 = vadd.s32 %v862, 72
        %v872 = vadd.s32 %v862, 80
        %v873 = vadd.s32 %v862, 88
        %v874 = vadd.s32 %v862, 96
        %v875 = vadd.s32 %v862, 104
        %v876 = vadd.s32 %v862, 112
        %v877 = vadd.s32 %v862, 120
        %v878 = vadd.s32 %v862, 128
        %v879 = vadd.s32 %v862, 136
        %v880 = vadd.s32 %v862, 144
        %v881 = vadd.s32 %v862, 152
        %v882 = vadd.s32 %v862, 160
        %v883 = vadd.s32 %v862, 168
        %v884 = vadd.s32 %v862, 176
        %v885 = vadd.s32 %v862, 184
        %v886 = vadd.s32 %v862, 192
        %v887 = vstv %s527
        %v888 = vadd.s32 %v887, %v862
        %v889 = vadd.s32 %v887, %v863
        %v890 = vadd.s32 %v887, %v864
        %v891 = vadd.s32 %v887, %v865
        %v892 = vadd.s32 %v887, %v866
        %v893 = vadd.s32 %v887, %v867
        %v894 = vadd.s32 %v887, %v868
        %v895 = vadd.s32 %v887, %v869
        %v896 = vadd.s32 %v887, %v870
        %v897 = vadd.s32 %v887, %v871
        %v898 = vadd.s32 %v887, %v872
        %v899 = vadd.s32 %v887, %v873
        %v900 = vadd.s32 %v887, %v874
        %v901 = vadd.s32 %v887, %v875
        %v902 = vadd.s32 %v887, %v876
        %v903 = vadd.s32 %v887, %v877
        %v904 = vadd.s32 %v887, %v878
        %v905 = vadd.s32 %v887, %v879
        %v906 = vadd.s32 %v887, %v880
        %v907 = vadd.s32 %v887, %v881
        %v908 = vadd.s32 %v887, %v882
        %v909 = vadd.s32 %v887, %v883
        %v910 = vadd.s32 %v887, %v884
        %v911 = vadd.s32 %v887, %v885
        %v912 = vadd.s32 %v887, %v886
        %vm913 = vcmp.lt.s32.totalorder %v888, 200
        %vm914 = vcmp.lt.s32.totalorder %v889, 200
        %vm915 = vcmp.lt.s32.totalorder %v890, 200
        %vm916 = vcmp.lt.s32.totalorder %v891, 200
        %vm917 = vcmp.lt.s32.totalorder %v892, 200
        %vm918 = vcmp.lt.s32.totalorder %v893, 200
        %vm919 = vcmp.lt.s32.totalorder %v894, 200
        %vm920 = vcmp.lt.s32.totalorder %v895, 200
        %vm921 = vcmp.lt.s32.totalorder %v896, 200
        %vm922 = vcmp.lt.s32.totalorder %v897, 200
        %vm923 = vcmp.lt.s32.totalorder %v898, 200
        %vm924 = vcmp.lt.s32.totalorder %v899, 200
        %vm925 = vcmp.lt.s32.totalorder %v900, 200
        %vm926 = vcmp.lt.s32.totalorder %v901, 200
        %vm927 = vcmp.lt.s32.totalorder %v902, 200
        %vm928 = vcmp.lt.s32.totalorder %v903, 200
        %vm929 = vcmp.lt.s32.totalorder %v904, 200
        %vm930 = vcmp.lt.s32.totalorder %v905, 200
        %vm931 = vcmp.lt.s32.totalorder %v906, 200
        %vm932 = vcmp.lt.s32.totalorder %v907, 200
        %vm933 = vcmp.lt.s32.totalorder %v908, 200
        %vm934 = vcmp.lt.s32.totalorder %v909, 200
        %vm935 = vcmp.lt.s32.totalorder %v910, 200
        %vm936 = vcmp.lt.s32.totalorder %v911, 200
        %vm937 = vcmp.lt.s32.totalorder %v912, 200
        %v938 = vsel %vm913, 1, 0
        %v939 = vsel %vm914, 1, 0
        %v940 = vsel %vm915, 1, 0
        %v941 = vsel %vm916, 1, 0
        %v942 = vsel %vm917, 1, 0
        %v943 = vsel %vm918, 1, 0
        %v944 = vsel %vm919, 1, 0
        %v945 = vsel %vm920, 1, 0
        %v946 = vsel %vm921, 1, 0
        %v947 = vsel %vm922, 1, 0
        %v948 = vsel %vm923, 1, 0
        %v949 = vsel %vm924, 1, 0
        %v950 = vsel %vm925, 1, 0
        %v951 = vsel %vm926, 1, 0
        %v952 = vsel %vm927, 1, 0
        %v953 = vsel %vm928, 1, 0
        %v954 = vsel %vm929, 1, 0
        %v955 = vsel %vm930, 1, 0
        %v956 = vsel %vm931, 1, 0
        %v957 = vsel %vm932, 1, 0
        %v958 = vsel %vm933, 1, 0
        %v959 = vsel %vm934, 1, 0
        %v960 = vsel %vm935, 1, 0
        %v961 = vsel %vm936, 1, 0
        %v962 = vsel %vm937, 1, 0
        %vm963 = vcmp.eq.s32.totalorder %v938, 1
        %vm964 = vcmp.eq.s32.totalorder %v939, 1
        %vm965 = vcmp.eq.s32.totalorder %v940, 1
        %vm966 = vcmp.eq.s32.totalorder %v941, 1
        %vm967 = vcmp.eq.s32.totalorder %v942, 1
        %vm968 = vcmp.eq.s32.totalorder %v943, 1
        %vm969 = vcmp.eq.s32.totalorder %v944, 1
        %vm970 = vcmp.eq.s32.totalorder %v945, 1
        %vm971 = vcmp.eq.s32.totalorder %v946, 1
        %vm972 = vcmp.eq.s32.totalorder %v947, 1
        %vm973 = vcmp.eq.s32.totalorder %v948, 1
        %vm974 = vcmp.eq.s32.totalorder %v949, 1
        %vm975 = vcmp.eq.s32.totalorder %v950, 1
        %vm976 = vcmp.eq.s32.totalorder %v951, 1
        %vm977 = vcmp.eq.s32.totalorder %v952, 1
        %vm978 = vcmp.eq.s32.totalorder %v953, 1
        %vm979 = vcmp.eq.s32.totalorder %v954, 1
        %vm980 = vcmp.eq.s32.totalorder %v955, 1
        %vm981 = vcmp.eq.s32.totalorder %v956, 1
        %vm982 = vcmp.eq.s32.totalorder %v957, 1
        %vm983 = vcmp.eq.s32.totalorder %v958, 1
        %vm984 = vcmp.eq.s32.totalorder %v959, 1
        %vm985 = vcmp.eq.s32.totalorder %v960, 1
        %vm986 = vcmp.eq.s32.totalorder %v961, 1
        %vm987 = vcmp.eq.s32.totalorder %v962, 1
        %v988 = vsel %vm963, %v836, 0.0
        %v989 = vsel %vm964, %v837, 0.0
        %v990 = vsel %vm965, %v838, 0.0
        %v991 = vsel %vm966, %v839, 0.0
        %v992 = vsel %vm967, %v840, 0.0
        %v993 = vsel %vm968, %v841, 0.0
        %v994 = vsel %vm969, %v842, 0.0
        %v995 = vsel %vm970, %v843, 0.0
        %v996 = vsel %vm971, %v844, 0.0
        %v997 = vsel %vm972, %v845, 0.0
        %v998 = vsel %vm973, %v846, 0.0
        %v999 = vsel %vm974, %v847, 0.0
        %v1000 = vsel %vm975, %v848, 0.0
        %v1001 = vsel %vm976, %v849, 0.0
        %v1002 = vsel %vm977, %v850, 0.0
        %v1003 = vsel %vm978, %v851, 0.0
        %v1004 = vsel %vm979, %v852, 0.0
        %v1005 = vsel %vm980, %v853, 0.0
        %v1006 = vsel %vm981, %v854, 0.0
        %v1007 = vsel %vm982, %v855, 0.0
        %v1008 = vsel %vm983, %v856, 0.0
        %v1009 = vsel %vm984, %v857, 0.0
        %v1010 = vsel %vm985, %v858, 0.0
        %v1011 = vsel %vm986, %v859, 0.0
        %v1012 = vsel %vm987, %v860, 0.0
        %v1013 = vld [vmem:[%s450] sm:$0xf]
        %1014 = vmatprep.subr.bf16.mxu0 0
        %1015 = vmatpush1.bf16.msra.mxu0 %v684
        %1016 = vmatprep.subr.bf16.mxu0 0
        %1017 = vmatpush1.bf16.msra.mxu0 %v685
        %1018 = vmatprep.subr.bf16.mxu0 0
        %1019 = vmatpush1.bf16.msra.mxu0 %v686
        %1020 = vmatprep.subr.bf16.mxu0 0
        %1021 = vmatpush1.bf16.msra.mxu0 %v687
        %1022 = vmatprep.subr.bf16.mxu0 0
        %1023 = vmatpush1.bf16.msra.mxu0 %v688
        %1024 = vmatprep.subr.bf16.mxu0 0
        %1025 = vmatpush1.bf16.msra.mxu0 %v689
        %1026 = vmatprep.subr.bf16.mxu0 0
        %1027 = vmatpush1.bf16.msra.mxu0 %v690
        %1028 = vmatprep.subr.bf16.mxu0 0
        %1029 = vmatpush1.bf16.msra.mxu0 %v691
        %1030 = vmatprep.subr.bf16.mxu0 0
        %1031 = vmatpush1.bf16.msra.mxu0 0
        %1032 = vmatprep.subr.bf16.mxu0 0
        %1033 = vmatpush1.bf16.msra.mxu0 0
        %1034 = vmatprep.subr.bf16.mxu0 0
        %1035 = vmatpush1.bf16.msra.mxu0 0
        %1036 = vmatprep.subr.bf16.mxu0 0
        %1037 = vmatpush1.bf16.msra.mxu0 0
        %1038 = vmatprep.subr.bf16.mxu0 0
        %1039 = vmatpush1.bf16.msra.mxu0 0
        %1040 = vmatprep.subr.bf16.mxu0 0
        %1041 = vmatpush1.bf16.msra.mxu0 0
        %1042 = vmatprep.subr.bf16.mxu0 0
        %1043 = vmatpush1.bf16.msra.mxu0 0
        %1044 = vmatprep.subr.bf16.mxu0 0
        %1045 = vmatpush1.bf16.msra.mxu0 0
        %1046 = vmatprep.mubr.bf16.mxu0 0
        %1047 = vmatmul.mubr.bf16.gmra.mrb[0].mxu0 %v1013
        %v1048 = vpop.f32.mrb[0].mxu0
        %v1049 = vadd.f32 %v574, %v1048
        %v1050 = vpop.f32.mrb[0].mxu0
        %v1051 = vpop.f32.mrb[0].mxu0
        %v1052 = vpop.f32.mrb[0].mxu0
        %1053 = vdwg.mxu0
        %v1054 = vmax.f32 %v1049, 0.0
        %v1055 = vld [vmem:[%s459] sm:$0xf]
        %1056 = vmatprep.subr.bf16.mxu0 0
        %1057 = vmatpush1.bf16.msra.mxu0 %v684
        %1058 = vmatprep.subr.bf16.mxu0 0
        %1059 = vmatpush1.bf16.msra.mxu0 %v685
        %1060 = vmatprep.subr.bf16.mxu0 0
        %1061 = vmatpush1.bf16.msra.mxu0 %v686
        %1062 = vmatprep.subr.bf16.mxu0 0
        %1063 = vmatpush1.bf16.msra.mxu0 %v687
        %1064 = vmatprep.subr.bf16.mxu0 0
        %1065 = vmatpush1.bf16.msra.mxu0 %v688
        %1066 = vmatprep.subr.bf16.mxu0 0
        %1067 = vmatpush1.bf16.msra.mxu0 %v689
        %1068 = vmatprep.subr.bf16.mxu0 0
        %1069 = vmatpush1.bf16.msra.mxu0 %v690
        %1070 = vmatprep.subr.bf16.mxu0 0
        %1071 = vmatpush1.bf16.msra.mxu0 %v691
        %1072 = vmatprep.subr.bf16.mxu0 0
        %1073 = vmatpush1.bf16.msra.mxu0 0
        %1074 = vmatprep.subr.bf16.mxu0 0
        %1075 = vmatpush1.bf16.msra.mxu0 0
        %1076 = vmatprep.subr.bf16.mxu0 0
        %1077 = vmatpush1.bf16.msra.mxu0 0
        %1078 = vmatprep.subr.bf16.mxu0 0
        %1079 = vmatpush1.bf16.msra.mxu0 0
        %1080 = vmatprep.subr.bf16.mxu0 0
        %1081 = vmatpush1.bf16.msra.mxu0 0
        %1082 = vmatprep.subr.bf16.mxu0 0
        %1083 = vmatpush1.bf16.msra.mxu0 0
        %1084 = vmatprep.subr.bf16.mxu0 0
        %1085 = vmatpush1.bf16.msra.mxu0 0
        %1086 = vmatprep.subr.bf16.mxu0 0
        %1087 = vmatpush1.bf16.msra.mxu0 0
        %1088 = vmatprep.mubr.bf16.mxu0 0
        %1089 = vmatmul.mubr.bf16.gmra.mrb[0].mxu0 %v1055
        %v1090 = vpop.f32.mrb[0].mxu0
        %v1091 = vadd.f32 %v574, %v1090
        %v1092 = vpop.f32.mrb[0].mxu0
        %v1093 = vpop.f32.mrb[0].mxu0
        %v1094 = vpop.f32.mrb[0].mxu0
        %1095 = vdwg.mxu0
        %v1096 = vmax.f32 %v1091, 0.0
        %p1097 = scmp.gt.s32.totalorder %s36, 0
        %s1098 = scalar_select %p1097, 1, 0
        %s1099 = scvt.s32.f32 %s1098
        %s1100 = sadd.s32 %s527, 200
        %p1101 = scmp.lt.s32.totalorder %s1100, 200
        %s1102 = scalar_select %p1101, 1, 0
        %s1103 = scvt.s32.f32 %s1102
        %v1104 = vstv %s1099
        %v1105 = vmul.f32 %v1054, %v1104
        %v1106 = vstv %s1103
        %v1107 = vmul.f32 %v1096, %v1106
        %v1108 = vrot.slane %v988, 7
        %v1109 = vrot.slane %v989, 7
        %v1110 = vrot.slane %v990, 7
        %v1111 = vrot.slane %v991, 7
        %v1112 = vrot.slane %v992, 7
        %v1113 = vrot.slane %v993, 7
        %v1114 = vrot.slane %v994, 7
        %v1115 = vrot.slane %v995, 7
        %v1116 = vrot.slane %v996, 7
        %v1117 = vrot.slane %v997, 7
        %v1118 = vrot.slane %v998, 7
        %v1119 = vrot.slane %v999, 7
        %v1120 = vrot.slane %v1000, 7
        %v1121 = vrot.slane %v1001, 7
        %v1122 = vrot.slane %v1002, 7
        %v1123 = vrot.slane %v1003, 7
        %v1124 = vrot.slane %v1004, 7
        %v1125 = vrot.slane %v1005, 7
        %v1126 = vrot.slane %v1006, 7
        %v1127 = vrot.slane %v1007, 7
        %v1128 = vrot.slane %v1008, 7
        %v1129 = vrot.slane %v1009, 7
        %v1130 = vrot.slane %v1010, 7
        %v1131 = vrot.slane %v1011, 7
        %v1132 = vrot.slane %v1012, 7
        %vm1133 = vcmp.lt.s32.totalorder %v862, 1
        %v1134 = vsel %vm1133, %v1131, %v1132
        %v1135 = vsel %vm1133, %v1130, %v1131
        %v1136 = vsel %vm1133, %v1129, %v1130
        %v1137 = vsel %vm1133, %v1128, %v1129
        %v1138 = vsel %vm1133, %v1127, %v1128
        %v1139 = vsel %vm1133, %v1126, %v1127
        %v1140 = vsel %vm1133, %v1125, %v1126
        %v1141 = vsel %vm1133, %v1124, %v1125
        %v1142 = vsel %vm1133, %v1123, %v1124
        %v1143 = vsel %vm1133, %v1122, %v1123
        %v1144 = vsel %vm1133, %v1121, %v1122
        %v1145 = vsel %vm1133, %v1120, %v1121
        %v1146 = vsel %vm1133, %v1119, %v1120
        %v1147 = vsel %vm1133, %v1118, %v1119
        %v1148 = vsel %vm1133, %v1117, %v1118
        %v1149 = vsel %vm1133, %v1116, %v1117
        %v1150 = vsel %vm1133, %v1115, %v1116
        %v1151 = vsel %vm1133, %v1114, %v1115
        %v1152 = vsel %vm1133, %v1113, %v1114
        %v1153 = vsel %vm1133, %v1112, %v1113
        %v1154 = vsel %vm1133, %v1111, %v1112
        %v1155 = vsel %vm1133, %v1110, %v1111
        %v1156 = vsel %vm1133, %v1109, %v1110
        %v1157 = vsel %vm1133, %v1108, %v1109
        %v1158 = vsel %vm1133, %v1132, %v1108
        %vm1159 = vcmp.eq.s32.totalorder %v862, 0
        %vm1160 = vcmp.eq.s32.totalorder %v863, 0
        %vm1161 = vcmp.eq.s32.totalorder %v864, 0
        %vm1162 = vcmp.eq.s32.totalorder %v865, 0
        %vm1163 = vcmp.eq.s32.totalorder %v866, 0
        %vm1164 = vcmp.eq.s32.totalorder %v867, 0
        %vm1165 = vcmp.eq.s32.totalorder %v868, 0
        %vm1166 = vcmp.eq.s32.totalorder %v869, 0
        %vm1167 = vcmp.eq.s32.totalorder %v870, 0
        %vm1168 = vcmp.eq.s32.totalorder %v871, 0
        %vm1169 = vcmp.eq.s32.totalorder %v872, 0
        %vm1170 = vcmp.eq.s32.totalorder %v873, 0
        %vm1171 = vcmp.eq.s32.totalorder %v874, 0
        %vm1172 = vcmp.eq.s32.totalorder %v875, 0
        %vm1173 = vcmp.eq.s32.totalorder %v876, 0
        %vm1174 = vcmp.eq.s32.totalorder %v877, 0
        %vm1175 = vcmp.eq.s32.totalorder %v878, 0
        %vm1176 = vcmp.eq.s32.totalorder %v879, 0
        %vm1177 = vcmp.eq.s32.totalorder %v880, 0
        %vm1178 = vcmp.eq.s32.totalorder %v881, 0
        %vm1179 = vcmp.eq.s32.totalorder %v882, 0
        %vm1180 = vcmp.eq.s32.totalorder %v883, 0
        %vm1181 = vcmp.eq.s32.totalorder %v884, 0
        %vm1182 = vcmp.eq.s32.totalorder %v885, 0
        %vm1183 = vcmp.eq.s32.totalorder %v886, 0
        %v1184 = vsel %vm1159, 1, 0
        %v1185 = vsel %vm1160, 1, 0
        %v1186 = vsel %vm1161, 1, 0
        %v1187 = vsel %vm1162, 1, 0
        %v1188 = vsel %vm1163, 1, 0
        %v1189 = vsel %vm1164, 1, 0
        %v1190 = vsel %vm1165, 1, 0
        %v1191 = vsel %vm1166, 1, 0
        %v1192 = vsel %vm1167, 1, 0
        %v1193 = vsel %vm1168, 1, 0
        %v1194 = vsel %vm1169, 1, 0
        %v1195 = vsel %vm1170, 1, 0
        %v1196 = vsel %vm1171, 1, 0
        %v1197 = vsel %vm1172, 1, 0
        %v1198 = vsel %vm1173, 1, 0
        %v1199 = vsel %vm1174, 1, 0
        %v1200 = vsel %vm1175, 1, 0
        %v1201 = vsel %vm1176, 1, 0
        %v1202 = vsel %vm1177, 1, 0
        %v1203 = vsel %vm1178, 1, 0
        %v1204 = vsel %vm1179, 1, 0
        %v1205 = vsel %vm1180, 1, 0
        %v1206 = vsel %vm1181, 1, 0
        %v1207 = vsel %vm1182, 1, 0
        %v1208 = vsel %vm1183, 1, 0
        %vm1209 = vcmp.eq.s32.totalorder %v1184, 1
        %vm1210 = vcmp.eq.s32.totalorder %v1185, 1
        %vm1211 = vcmp.eq.s32.totalorder %v1186, 1
        %vm1212 = vcmp.eq.s32.totalorder %v1187, 1
        %vm1213 = vcmp.eq.s32.totalorder %v1188, 1
        %vm1214 = vcmp.eq.s32.totalorder %v1189, 1
        %vm1215 = vcmp.eq.s32.totalorder %v1190, 1
        %vm1216 = vcmp.eq.s32.totalorder %v1191, 1
        %vm1217 = vcmp.eq.s32.totalorder %v1192, 1
        %vm1218 = vcmp.eq.s32.totalorder %v1193, 1
        %vm1219 = vcmp.eq.s32.totalorder %v1194, 1
        %vm1220 = vcmp.eq.s32.totalorder %v1195, 1
        %vm1221 = vcmp.eq.s32.totalorder %v1196, 1
        %vm1222 = vcmp.eq.s32.totalorder %v1197, 1
        %vm1223 = vcmp.eq.s32.totalorder %v1198, 1
        %vm1224 = vcmp.eq.s32.totalorder %v1199, 1
        %vm1225 = vcmp.eq.s32.totalorder %v1200, 1
        %vm1226 = vcmp.eq.s32.totalorder %v1201, 1
        %vm1227 = vcmp.eq.s32.totalorder %v1202, 1
        %vm1228 = vcmp.eq.s32.totalorder %v1203, 1
        %vm1229 = vcmp.eq.s32.totalorder %v1204, 1
        %vm1230 = vcmp.eq.s32.totalorder %v1205, 1
        %vm1231 = vcmp.eq.s32.totalorder %v1206, 1
        %vm1232 = vcmp.eq.s32.totalorder %v1207, 1
        %vm1233 = vcmp.eq.s32.totalorder %v1208, 1
        %v1234 = vlaneseq
        %v1235 = vshrl.u32 %v1234, 7
        %v1236 = vsub.s32 7, %v1235
        %v1237 = vrot.slane %v1105, %v1236
        %v1238 = vsel %vm1209, %v1237, %v1158
        %v1239 = vsel %vm1210, %v1237, %v1157
        %v1240 = vsel %vm1211, %v1237, %v1156
        %v1241 = vsel %vm1212, %v1237, %v1155
        %v1242 = vsel %vm1213, %v1237, %v1154
        %v1243 = vsel %vm1214, %v1237, %v1153
        %v1244 = vsel %vm1215, %v1237, %v1152
        %v1245 = vsel %vm1216, %v1237, %v1151
        %v1246 = vsel %vm1217, %v1237, %v1150
        %v1247 = vsel %vm1218, %v1237, %v1149
        %v1248 = vsel %vm1219, %v1237, %v1148
        %v1249 = vsel %vm1220, %v1237, %v1147
        %v1250 = vsel %vm1221, %v1237, %v1146
        %v1251 = vsel %vm1222, %v1237, %v1145
        %v1252 = vsel %vm1223, %v1237, %v1144
        %v1253 = vsel %vm1224, %v1237, %v1143
        %v1254 = vsel %vm1225, %v1237, %v1142
        %v1255 = vsel %vm1226, %v1237, %v1141
        %v1256 = vsel %vm1227, %v1237, %v1140
        %v1257 = vsel %vm1228, %v1237, %v1139
        %v1258 = vsel %vm1229, %v1237, %v1138
        %v1259 = vsel %vm1230, %v1237, %v1137
        %v1260 = vsel %vm1231, %v1237, %v1136
        %v1261 = vsel %vm1232, %v1237, %v1135
        %v1262 = vsel %vm1233, %v1237, %v1134
        %v1263 = vrot.slane %v988, 1
        %v1264 = vrot.slane %v989, 1
        %v1265 = vrot.slane %v990, 1
        %v1266 = vrot.slane %v991, 1
        %v1267 = vrot.slane %v992, 1
        %v1268 = vrot.slane %v993, 1
        %v1269 = vrot.slane %v994, 1
        %v1270 = vrot.slane %v995, 1
        %v1271 = vrot.slane %v996, 1
        %v1272 = vrot.slane %v997, 1
        %v1273 = vrot.slane %v998, 1
        %v1274 = vrot.slane %v999, 1
        %v1275 = vrot.slane %v1000, 1
        %v1276 = vrot.slane %v1001, 1
        %v1277 = vrot.slane %v1002, 1
        %v1278 = vrot.slane %v1003, 1
        %v1279 = vrot.slane %v1004, 1
        %v1280 = vrot.slane %v1005, 1
        %v1281 = vrot.slane %v1006, 1
        %v1282 = vrot.slane %v1007, 1
        %v1283 = vrot.slane %v1008, 1
        %v1284 = vrot.slane %v1009, 1
        %v1285 = vrot.slane %v1010, 1
        %v1286 = vrot.slane %v1011, 1
        %v1287 = vrot.slane %v1012, 1
        %vm1288 = vcmp.lt.s32.totalorder %v862, 7
        %v1289 = vsel %vm1288, %v1286, %v1287
        %v1290 = vsel %vm1288, %v1285, %v1286
        %v1291 = vsel %vm1288, %v1284, %v1285
        %v1292 = vsel %vm1288, %v1283, %v1284
        %v1293 = vsel %vm1288, %v1282, %v1283
        %v1294 = vsel %vm1288, %v1281, %v1282
        %v1295 = vsel %vm1288, %v1280, %v1281
        %v1296 = vsel %vm1288, %v1279, %v1280
        %v1297 = vsel %vm1288, %v1278, %v1279
        %v1298 = vsel %vm1288, %v1277, %v1278
        %v1299 = vsel %vm1288, %v1276, %v1277
        %v1300 = vsel %vm1288, %v1275, %v1276
        %v1301 = vsel %vm1288, %v1274, %v1275
        %v1302 = vsel %vm1288, %v1273, %v1274
        %v1303 = vsel %vm1288, %v1272, %v1273
        %v1304 = vsel %vm1288, %v1271, %v1272
        %v1305 = vsel %vm1288, %v1270, %v1271
        %v1306 = vsel %vm1288, %v1269, %v1270
        %v1307 = vsel %vm1288, %v1268, %v1269
        %v1308 = vsel %vm1288, %v1267, %v1268
        %v1309 = vsel %vm1288, %v1266, %v1267
        %v1310 = vsel %vm1288, %v1265, %v1266
        %v1311 = vsel %vm1288, %v1264, %v1265
        %v1312 = vsel %vm1288, %v1263, %v1264
        %v1313 = vsel %vm1288, %v1287, %v1263
        %vm1314 = vcmp.eq.s32.totalorder %v862, 199
        %vm1315 = vcmp.eq.s32.totalorder %v863, 199
        %vm1316 = vcmp.eq.s32.totalorder %v864, 199
        %vm1317 = vcmp.eq.s32.totalorder %v865, 199
        %vm1318 = vcmp.eq.s32.totalorder %v866, 199
        %vm1319 = vcmp.eq.s32.totalorder %v867, 199
        %vm1320 = vcmp.eq.s32.totalorder %v868, 199
        %vm1321 = vcmp.eq.s32.totalorder %v869, 199
        %vm1322 = vcmp.eq.s32.totalorder %v870, 199
        %vm1323 = vcmp.eq.s32.totalorder %v871, 199
        %vm1324 = vcmp.eq.s32.totalorder %v872, 199
        %vm1325 = vcmp.eq.s32.totalorder %v873, 199
        %vm1326 = vcmp.eq.s32.totalorder %v874, 199
        %vm1327 = vcmp.eq.s32.totalorder %v875, 199
        %vm1328 = vcmp.eq.s32.totalorder %v876, 199
        %vm1329 = vcmp.eq.s32.totalorder %v877, 199
        %vm1330 = vcmp.eq.s32.totalorder %v878, 199
        %vm1331 = vcmp.eq.s32.totalorder %v879, 199
        %vm1332 = vcmp.eq.s32.totalorder %v880, 199
        %vm1333 = vcmp.eq.s32.totalorder %v881, 199
        %vm1334 = vcmp.eq.s32.totalorder %v882, 199
        %vm1335 = vcmp.eq.s32.totalorder %v883, 199
        %vm1336 = vcmp.eq.s32.totalorder %v884, 199
        %vm1337 = vcmp.eq.s32.totalorder %v885, 199
        %vm1338 = vcmp.eq.s32.totalorder %v886, 199
        %v1339 = vsel %vm1314, 1, 0
        %v1340 = vsel %vm1315, 1, 0
        %v1341 = vsel %vm1316, 1, 0
        %v1342 = vsel %vm1317, 1, 0
        %v1343 = vsel %vm1318, 1, 0
        %v1344 = vsel %vm1319, 1, 0
        %v1345 = vsel %vm1320, 1, 0
        %v1346 = vsel %vm1321, 1, 0
        %v1347 = vsel %vm1322, 1, 0
        %v1348 = vsel %vm1323, 1, 0
        %v1349 = vsel %vm1324, 1, 0
        %v1350 = vsel %vm1325, 1, 0
        %v1351 = vsel %vm1326, 1, 0
        %v1352 = vsel %vm1327, 1, 0
        %v1353 = vsel %vm1328, 1, 0
        %v1354 = vsel %vm1329, 1, 0
        %v1355 = vsel %vm1330, 1, 0
        %v1356 = vsel %vm1331, 1, 0
        %v1357 = vsel %vm1332, 1, 0
        %v1358 = vsel %vm1333, 1, 0
        %v1359 = vsel %vm1334, 1, 0
        %v1360 = vsel %vm1335, 1, 0
        %v1361 = vsel %vm1336, 1, 0
        %v1362 = vsel %vm1337, 1, 0
        %v1363 = vsel %vm1338, 1, 0
        %vm1364 = vcmp.eq.s32.totalorder %v1339, 1
        %vm1365 = vcmp.eq.s32.totalorder %v1340, 1
        %vm1366 = vcmp.eq.s32.totalorder %v1341, 1
        %vm1367 = vcmp.eq.s32.totalorder %v1342, 1
        %vm1368 = vcmp.eq.s32.totalorder %v1343, 1
        %vm1369 = vcmp.eq.s32.totalorder %v1344, 1
        %vm1370 = vcmp.eq.s32.totalorder %v1345, 1
        %vm1371 = vcmp.eq.s32.totalorder %v1346, 1
        %vm1372 = vcmp.eq.s32.totalorder %v1347, 1
        %vm1373 = vcmp.eq.s32.totalorder %v1348, 1
        %vm1374 = vcmp.eq.s32.totalorder %v1349, 1
        %vm1375 = vcmp.eq.s32.totalorder %v1350, 1
        %vm1376 = vcmp.eq.s32.totalorder %v1351, 1
        %vm1377 = vcmp.eq.s32.totalorder %v1352, 1
        %vm1378 = vcmp.eq.s32.totalorder %v1353, 1
        %vm1379 = vcmp.eq.s32.totalorder %v1354, 1
        %vm1380 = vcmp.eq.s32.totalorder %v1355, 1
        %vm1381 = vcmp.eq.s32.totalorder %v1356, 1
        %vm1382 = vcmp.eq.s32.totalorder %v1357, 1
        %vm1383 = vcmp.eq.s32.totalorder %v1358, 1
        %vm1384 = vcmp.eq.s32.totalorder %v1359, 1
        %vm1385 = vcmp.eq.s32.totalorder %v1360, 1
        %vm1386 = vcmp.eq.s32.totalorder %v1361, 1
        %vm1387 = vcmp.eq.s32.totalorder %v1362, 1
        %vm1388 = vcmp.eq.s32.totalorder %v1363, 1
        %v1389 = vlaneseq
        %v1390 = vshrl.u32 %v1389, 7
        %v1391 = vsub.s32 0, %v1390
        %v1392 = vrot.slane %v1107, %v1391
        %v1393 = vsel %vm1364, %v1392, %v1312
        %v1394 = vsel %vm1365, %v1392, %v1311
        %v1395 = vsel %vm1366, %v1392, %v1310
        %v1396 = vsel %vm1367, %v1392, %v1309
        %v1397 = vsel %vm1368, %v1392, %v1308
        %v1398 = vsel %vm1369, %v1392, %v1307
        %v1399 = vsel %vm1370, %v1392, %v1306
        %v1400 = vsel %vm1371, %v1392, %v1305
        %v1401 = vsel %vm1372, %v1392, %v1304
        %v1402 = vsel %vm1373, %v1392, %v1303
        %v1403 = vsel %vm1374, %v1392, %v1302
        %v1404 = vsel %vm1375, %v1392, %v1301
        %v1405 = vsel %vm1376, %v1392, %v1300
        %v1406 = vsel %vm1377, %v1392, %v1299
        %v1407 = vsel %vm1378, %v1392, %v1298
        %v1408 = vsel %vm1379, %v1392, %v1297
        %v1409 = vsel %vm1380, %v1392, %v1296
        %v1410 = vsel %vm1381, %v1392, %v1295
        %v1411 = vsel %vm1382, %v1392, %v1294
        %v1412 = vsel %vm1383, %v1392, %v1293
        %v1413 = vsel %vm1384, %v1392, %v1292
        %v1414 = vsel %vm1385, %v1392, %v1291
        %v1415 = vsel %vm1386, %v1392, %v1290
        %v1416 = vsel %vm1387, %v1392, %v1289
        %v1417 = vsel %vm1388, %v1392, %v1313
        %v1418 = vpack.c.bf16 %v1239, %v1238
        %v1419 = vpack.c.bf16 %v989, %v988
        %v1420 = vpack.c.bf16 %v1394, %v1393
        %v1421 = vpack.c.bf16 %v1241, %v1240
        %v1422 = vpack.c.bf16 %v991, %v990
        %v1423 = vpack.c.bf16 %v1396, %v1395
        %v1424 = vpack.c.bf16 %v1243, %v1242
        %v1425 = vpack.c.bf16 %v993, %v992
        %v1426 = vpack.c.bf16 %v1398, %v1397
        %v1427 = vpack.c.bf16 %v1245, %v1244
        %v1428 = vpack.c.bf16 %v995, %v994
        %v1429 = vpack.c.bf16 %v1400, %v1399
        %v1430 = vpack.c.bf16 %v1247, %v1246
        %v1431 = vpack.c.bf16 %v997, %v996
        %v1432 = vpack.c.bf16 %v1402, %v1401
        %v1433 = vpack.c.bf16 %v1249, %v1248
        %v1434 = vpack.c.bf16 %v999, %v998
        %v1435 = vpack.c.bf16 %v1404, %v1403
        %v1436 = vpack.c.bf16 %v1251, %v1250
        %v1437 = vpack.c.bf16 %v1001, %v1000
        %v1438 = vpack.c.bf16 %v1406, %v1405
        %v1439 = vpack.c.bf16 %v1253, %v1252
        %v1440 = vpack.c.bf16 %v1003, %v1002
        %v1441 = vpack.c.bf16 %v1408, %v1407
        %v1442 = vpack.c.bf16 %v1255, %v1254
        %v1443 = vpack.c.bf16 %v1005, %v1004
        %v1444 = vpack.c.bf16 %v1410, %v1409
        %v1445 = vpack.c.bf16 %v1257, %v1256
        %v1446 = vpack.c.bf16 %v1007, %v1006
        %v1447 = vpack.c.bf16 %v1412, %v1411
        %v1448 = vpack.c.bf16 %v1259, %v1258
        %v1449 = vpack.c.bf16 %v1009, %v1008
        %v1450 = vpack.c.bf16 %v1414, %v1413
        %v1451 = vpack.c.bf16 %v1261, %v1260
        %v1452 = vpack.c.bf16 %v1011, %v1010
        %v1453 = vpack.c.bf16 %v1416, %v1415
        %v1454 = vpack.c.bf16 %v1262, %v1262
        %v1455 = vpack.c.bf16 %v1012, %v1012
        %v1456 = vpack.c.bf16 %v1417, %v1417
        %v1457 = vld [vmem:[#allocation10] sm:$0xf]
        %v1458 = vld [vmem:[#allocation10 + $0x4] sm:$0xf]
        %v1459 = vld [vmem:[#allocation10 + $0x8] sm:$0xf]
        %v1460 = vld [vmem:[#allocation10 + $0xc] sm:$0xf]
        %v1461 = vld [vmem:[#allocation10 + $0x10] sm:$0xf]
        %v1462 = vld [vmem:[#allocation10 + $0x14] sm:$0xf]
        %v1463 = vld [vmem:[#allocation10 + $0x18] sm:$0xf]
        %v1464 = vld [vmem:[#allocation10 + $0x1c] sm:$0xf]
        %v1465 = vld [vmem:[#allocation10 + $0x20] sm:$0xf]
        %v1466 = vld [vmem:[#allocation10 + $0x24] sm:$0xf]
        %v1467 = vld [vmem:[#allocation10 + $0x28] sm:$0xf]
        %v1468 = vld [vmem:[#allocation10 + $0x2c] sm:$0xf]
        %v1469 = vld [vmem:[#allocation10 + $0x30] sm:$0xf]
        %v1470 = vld [vmem:[#allocation10 + $0x34] sm:$0xf]
        %v1471 = vld [vmem:[#allocation10 + $0x38] sm:$0xf]
        %v1472 = vld [vmem:[#allocation10 + $0x3c] sm:$0xf]
        %v1473 = vld [vmem:[#allocation10 + $0x40] sm:$0xf]
        %v1474 = vld [vmem:[#allocation10 + $0x44] sm:$0xf]
        %v1475 = vld [vmem:[#allocation10 + $0x48] sm:$0xf]
        %v1476 = vld [vmem:[#allocation10 + $0x4c] sm:$0xf]
        %v1477 = vld [vmem:[#allocation10 + $0x50] sm:$0xf]
        %v1478 = vld [vmem:[#allocation10 + $0x54] sm:$0xf]
        %v1479 = vld [vmem:[#allocation10 + $0x58] sm:$0xf]
        %v1480 = vld [vmem:[#allocation10 + $0x5c] sm:$0xf]
        %v1481 = vld [vmem:[#allocation10 + $0x60] sm:$0xf]
        %v1482 = vld [vmem:[#allocation10 + $0x64] sm:$0xf]
        %v1483 = vld [vmem:[#allocation10 + $0x68] sm:$0xf]
        %v1484 = vld [vmem:[#allocation10 + $0x6c] sm:$0xf]
        %v1485 = vld [vmem:[#allocation10 + $0x70] sm:$0xf]
        %v1486 = vld [vmem:[#allocation10 + $0x74] sm:$0xf]
        %v1487 = vld [vmem:[#allocation10 + $0x78] sm:$0xf]
        %v1488 = vld [vmem:[#allocation10 + $0x7c] sm:$0xf]
        %v1489 = vld [vmem:[#allocation10 + $0x80] sm:$0xf]
        %v1490 = vld [vmem:[#allocation10 + $0x84] sm:$0xf]
        %v1491 = vld [vmem:[#allocation10 + $0x88] sm:$0xf]
        %v1492 = vld [vmem:[#allocation10 + $0x8c] sm:$0xf]
        %v1493 = vld [vmem:[#allocation10 + $0x90] sm:$0xf]
        %v1494 = vld [vmem:[#allocation10 + $0x94] sm:$0xf]
        %v1495 = vld [vmem:[#allocation10 + $0x98] sm:$0xf]
        %v1496 = vld [vmem:[#allocation10 + $0x9c] sm:$0xf]
        %v1497 = vld [vmem:[#allocation10 + $0xa0] sm:$0xf]
        %v1498 = vld [vmem:[#allocation10 + $0xa4] sm:$0xf]
        %v1499 = vld [vmem:[#allocation10 + $0xa8] sm:$0xf]
        %v1500 = vld [vmem:[#allocation10 + $0xac] sm:$0xf]
        %v1501 = vld [vmem:[#allocation10 + $0xb0] sm:$0xf]
        %v1502 = vld [vmem:[#allocation10 + $0xb4] sm:$0xf]
        %v1503 = vld [vmem:[#allocation10 + $0xb8] sm:$0xf]
        %v1504 = vld [vmem:[#allocation10 + $0xbc] sm:$0xf]
        %v1505 = vld [vmem:[%s6] sm:$0x1]
        %v1507 = vlaneseq
        %v1508 = vshrl.u32 %v1507, 7
        %v1509 = vsub.s32 0, %v1508
        %v1510 = vrot.slane %v1505, %v1509
        %v1560 = vunpack.c.l.b16 %v1457
        %v1561 = vunpack.c.l.b16 %v1458
        %v1562 = vunpack.c.l.b16 %v1459
        %v1563 = vunpack.c.l.b16 %v1460
        %v1564 = vunpack.c.l.b16 %v1461
        %v1565 = vunpack.c.l.b16 %v1462
        %v1566 = vunpack.c.l.b16 %v1463
        %v1567 = vunpack.c.l.b16 %v1464
        %v1568 = vunpack.c.l.b16 %v1465
        %v1569 = vunpack.c.l.b16 %v1466
        %v1570 = vunpack.c.l.b16 %v1467
        %v1571 = vunpack.c.l.b16 %v1468
        %v1572 = vunpack.c.l.b16 %v1469
        %v1573 = vunpack.c.l.b16 %v1470
        %v1574 = vunpack.c.l.b16 %v1471
        %v1575 = vunpack.c.l.b16 %v1472
        %v1576 = vunpack.c.l.b16 %v1473
        %v1577 = vunpack.c.l.b16 %v1474
        %v1578 = vunpack.c.l.b16 %v1475
        %v1579 = vunpack.c.l.b16 %v1476
        %v1580 = vunpack.c.l.b16 %v1477
        %v1581 = vunpack.c.l.b16 %v1478
        %v1582 = vunpack.c.l.b16 %v1479
        %v1583 = vunpack.c.l.b16 %v1480
        %v1584 = vunpack.c.l.b16 %v1481
        %v1585 = vunpack.c.l.b16 %v1482
        %v1586 = vunpack.c.l.b16 %v1483
        %v1587 = vunpack.c.l.b16 %v1484
        %v1588 = vunpack.c.l.b16 %v1485
        %v1589 = vunpack.c.l.b16 %v1486
        %v1590 = vunpack.c.l.b16 %v1487
        %v1591 = vunpack.c.l.b16 %v1488
        %v1592 = vunpack.c.l.b16 %v1489
        %v1593 = vunpack.c.l.b16 %v1490
        %v1594 = vunpack.c.l.b16 %v1491
        %v1595 = vunpack.c.l.b16 %v1492
        %v1596 = vunpack.c.l.b16 %v1493
        %v1597 = vunpack.c.l.b16 %v1494
        %v1598 = vunpack.c.l.b16 %v1495
        %v1599 = vunpack.c.l.b16 %v1496
        %v1600 = vunpack.c.l.b16 %v1497
        %v1601 = vunpack.c.l.b16 %v1498
        %v1602 = vunpack.c.l.b16 %v1499
        %v1603 = vunpack.c.l.b16 %v1500
        %v1604 = vunpack.c.l.b16 %v1501
        %v1605 = vunpack.c.l.b16 %v1502
        %v1606 = vunpack.c.l.b16 %v1503
        %v1607 = vunpack.c.l.b16 %v1504
        %v1608 = vpack.c.b16 %v1561, %v1560
        %v1609 = vpack.c.b16 %v1563, %v1562
        %v1610 = vpack.c.b16 %v1565, %v1564
        %v1611 = vpack.c.b16 %v1567, %v1566
        %v1612 = vpack.c.b16 %v1569, %v1568
        %v1613 = vpack.c.b16 %v1571, %v1570
        %v1614 = vpack.c.b16 %v1573, %v1572
        %v1615 = vpack.c.b16 %v1575, %v1574
        %v1616 = vpack.c.b16 %v1577, %v1576
        %v1617 = vpack.c.b16 %v1579, %v1578
        %v1618 = vpack.c.b16 %v1581, %v1580
        %v1619 = vpack.c.b16 %v1583, %v1582
        %v1620 = vpack.c.b16 %v1585, %v1584
        %v1621 = vpack.c.b16 %v1587, %v1586
        %v1622 = vpack.c.b16 %v1589, %v1588
        %v1623 = vpack.c.b16 %v1591, %v1590
        %v1624 = vpack.c.b16 %v1593, %v1592
        %v1625 = vpack.c.b16 %v1595, %v1594
        %v1626 = vpack.c.b16 %v1597, %v1596
        %v1627 = vpack.c.b16 %v1599, %v1598
        %v1628 = vpack.c.b16 %v1601, %v1600
        %v1629 = vpack.c.b16 %v1603, %v1602
        %v1630 = vpack.c.b16 %v1605, %v1604
        %v1631 = vpack.c.b16 %v1607, %v1606
        %1656 = vmatprep.subr.bf16.mxu0 0
        %1657 = vmatpush1.bf16.msra.mxu0 %v1608
        %1658 = vmatprep.subr.bf16.mxu0 0
        %1659 = vmatpush1.bf16.msra.mxu0 %v1609
        %1660 = vmatprep.subr.bf16.mxu0 0
        %1661 = vmatpush1.bf16.msra.mxu0 %v1610
        %1662 = vmatprep.subr.bf16.mxu0 0
        %1663 = vmatpush1.bf16.msra.mxu0 %v1611
        %1664 = vmatprep.subr.bf16.mxu0 0
        %1665 = vmatpush1.bf16.msra.mxu0 %v1612
        %1666 = vmatprep.subr.bf16.mxu0 0
        %1667 = vmatpush1.bf16.msra.mxu0 %v1613
        %1668 = vmatprep.subr.bf16.mxu0 0
        %1669 = vmatpush1.bf16.msra.mxu0 %v1614
        %1670 = vmatprep.subr.bf16.mxu0 0
        %1671 = vmatpush1.bf16.msra.mxu0 %v1615
        %1672 = vmatprep.subr.bf16.mxu0 0
        %1673 = vmatpush1.bf16.msra.mxu0 %v1616
        %1674 = vmatprep.subr.bf16.mxu0 0
        %1675 = vmatpush1.bf16.msra.mxu0 %v1617
        %1676 = vmatprep.subr.bf16.mxu0 0
        %1677 = vmatpush1.bf16.msra.mxu0 %v1618
        %1678 = vmatprep.subr.bf16.mxu0 0
        %1679 = vmatpush1.bf16.msra.mxu0 %v1619
        %1680 = vmatprep.subr.bf16.mxu0 0
        %1681 = vmatpush1.bf16.msra.mxu0 %v1620
        %1682 = vmatprep.subr.bf16.mxu0 0
        %1683 = vmatpush1.bf16.msra.mxu0 %v1621
        %1684 = vmatprep.subr.bf16.mxu0 0
        %1685 = vmatpush1.bf16.msra.mxu0 %v1622
        %1686 = vmatprep.subr.bf16.mxu0 0
        %1687 = vmatpush1.bf16.msra.mxu0 %v1623
        %1688 = vmatprep.mubr.bf16.mxu0 %v1419
        %1689 = vmatmul.mubr.bf16.gmra.mrb[0].mxu0 %v1418
        %v1690 = vpop.f32.mrb[0].mxu0
        %v1691 = vadd.f32 %v1510, %v1690
        %v1692 = vpop.f32.mrb[0].mxu0
        %v1693 = vpop.f32.mrb[0].mxu0
        %v1694 = vadd.f32 %v1510, %v1693
        %v1695 = vpop.f32.mrb[0].mxu0
        %1696 = vmatprep.mubr.bf16.mxu0 %v1422
        %1697 = vmatmul.mubr.bf16.gmra.mrb[0].mxu0 %v1421
        %v1698 = vpop.f32.mrb[0].mxu0
        %v1699 = vadd.f32 %v1510, %v1698
        %v1700 = vpop.f32.mrb[0].mxu0
        %v1701 = vpop.f32.mrb[0].mxu0
        %v1702 = vadd.f32 %v1510, %v1701
        %v1703 = vpop.f32.mrb[0].mxu0
        %1704 = vmatprep.mubr.bf16.mxu0 %v1425
        %1705 = vmatmul.mubr.bf16.gmra.mrb[0].mxu0 %v1424
        %v1706 = vpop.f32.mrb[0].mxu0
        %v1707 = vadd.f32 %v1510, %v1706
        %v1708 = vpop.f32.mrb[0].mxu0
        %v1709 = vpop.f32.mrb[0].mxu0
        %v1710 = vadd.f32 %v1510, %v1709
        %v1711 = vpop.f32.mrb[0].mxu0
        %1712 = vmatprep.mubr.bf16.mxu0 %v1428
        %1713 = vmatmul.mubr.bf16.gmra.mrb[0].mxu0 %v1427
        %v1714 = vpop.f32.mrb[0].mxu0
        %v1715 = vadd.f32 %v1510, %v1714
        %v1716 = vpop.f32.mrb[0].mxu0
        %v1717 = vpop.f32.mrb[0].mxu0
        %v1718 = vadd.f32 %v1510, %v1717
        %v1719 = vpop.f32.mrb[0].mxu0
        %1720 = vmatprep.mubr.bf16.mxu0 %v1431
        %1721 = vmatmul.mubr.bf16.gmra.mrb[0].mxu0 %v1430
        %v1722 = vpop.f32.mrb[0].mxu0
        %v1723 = vadd.f32 %v1510, %v1722
        %v1724 = vpop.f32.mrb[0].mxu0
        %v1725 = vpop.f32.mrb[0].mxu0
        %v1726 = vadd.f32 %v1510, %v1725
        %v1727 = vpop.f32.mrb[0].mxu0
        %1728 = vmatprep.mubr.bf16.mxu0 %v1434
        %1729 = vmatmul.mubr.bf16.gmra.mrb[0].mxu0 %v1433
        %v1730 = vpop.f32.mrb[0].mxu0
        %v1731 = vadd.f32 %v1510, %v1730
        %v1732 = vpop.f32.mrb[0].mxu0
        %v1733 = vpop.f32.mrb[0].mxu0
        %v1734 = vadd.f32 %v1510, %v1733
        %v1735 = vpop.f32.mrb[0].mxu0
        %1736 = vmatprep.mubr.bf16.mxu0 %v1437
        %1737 = vmatmul.mubr.bf16.gmra.mrb[0].mxu0 %v1436
        %v1738 = vpop.f32.mrb[0].mxu0
        %v1739 = vadd.f32 %v1510, %v1738
        %v1740 = vpop.f32.mrb[0].mxu0
        %v1741 = vpop.f32.mrb[0].mxu0
        %v1742 = vadd.f32 %v1510, %v1741
        %v1743 = vpop.f32.mrb[0].mxu0
        %1744 = vmatprep.mubr.bf16.mxu0 %v1440
        %1745 = vmatmul.mubr.bf16.gmra.mrb[0].mxu0 %v1439
        %v1746 = vpop.f32.mrb[0].mxu0
        %v1747 = vadd.f32 %v1510, %v1746
        %v1748 = vpop.f32.mrb[0].mxu0
        %v1749 = vpop.f32.mrb[0].mxu0
        %v1750 = vadd.f32 %v1510, %v1749
        %v1751 = vpop.f32.mrb[0].mxu0
        %1752 = vmatprep.mubr.bf16.mxu0 %v1443
        %1753 = vmatmul.mubr.bf16.gmra.mrb[0].mxu0 %v1442
        %v1754 = vpop.f32.mrb[0].mxu0
        %v1755 = vadd.f32 %v1510, %v1754
        %v1756 = vpop.f32.mrb[0].mxu0
        %v1757 = vpop.f32.mrb[0].mxu0
        %v1758 = vadd.f32 %v1510, %v1757
        %v1759 = vpop.f32.mrb[0].mxu0
        %1760 = vmatprep.mubr.bf16.mxu0 %v1446
        %1761 = vmatmul.mubr.bf16.gmra.mrb[0].mxu0 %v1445
        %v1762 = vpop.f32.mrb[0].mxu0
        %v1763 = vadd.f32 %v1510, %v1762
        %v1764 = vpop.f32.mrb[0].mxu0
        %v1765 = vpop.f32.mrb[0].mxu0
        %v1766 = vadd.f32 %v1510, %v1765
        %v1767 = vpop.f32.mrb[0].mxu0
        %1768 = vmatprep.mubr.bf16.mxu0 %v1449
        %1769 = vmatmul.mubr.bf16.gmra.mrb[0].mxu0 %v1448
        %v1770 = vpop.f32.mrb[0].mxu0
        %v1771 = vadd.f32 %v1510, %v1770
        %v1772 = vpop.f32.mrb[0].mxu0
        %v1773 = vpop.f32.mrb[0].mxu0
        %v1774 = vadd.f32 %v1510, %v1773
        %v1775 = vpop.f32.mrb[0].mxu0
        %1776 = vmatprep.mubr.bf16.mxu0 %v1452
        %1777 = vmatmul.mubr.bf16.gmra.mrb[0].mxu0 %v1451
        %v1778 = vpop.f32.mrb[0].mxu0
        %v1779 = vadd.f32 %v1510, %v1778
        %v1780 = vpop.f32.mrb[0].mxu0
        %v1781 = vpop.f32.mrb[0].mxu0
        %v1782 = vadd.f32 %v1510, %v1781
        %v1783 = vpop.f32.mrb[0].mxu0
        %1784 = vmatprep.mubr.bf16.mxu0 %v1455
        %1785 = vmatmul.mubr.bf16.gmra.mrb[0].mxu0 %v1454
        %v1786 = vpop.f32.mrb[0].mxu0
        %v1787 = vadd.f32 %v1510, %v1786
        %v1788 = vpop.f32.mrb[0].mxu0
        %v1789 = vpop.f32.mrb[0].mxu0
        %v1790 = vpop.f32.mrb[0].mxu0
        %1791 = vdwg.mxu0
        %1792 = vmatprep.subr.bf16.mxu0 0
        %1793 = vmatpush1.bf16.msra.mxu0 %v1624
        %1794 = vmatprep.subr.bf16.mxu0 0
        %1795 = vmatpush1.bf16.msra.mxu0 %v1625
        %1796 = vmatprep.subr.bf16.mxu0 0
        %1797 = vmatpush1.bf16.msra.mxu0 %v1626
        %1798 = vmatprep.subr.bf16.mxu0 0
        %1799 = vmatpush1.bf16.msra.mxu0 %v1627
        %1800 = vmatprep.subr.bf16.mxu0 0
        %1801 = vmatpush1.bf16.msra.mxu0 %v1628
        %1802 = vmatprep.subr.bf16.mxu0 0
        %1803 = vmatpush1.bf16.msra.mxu0 %v1629
        %1804 = vmatprep.subr.bf16.mxu0 0
        %1805 = vmatpush1.bf16.msra.mxu0 %v1630
        %1806 = vmatprep.subr.bf16.mxu0 0
        %1807 = vmatpush1.bf16.msra.mxu0 %v1631
        %1808 = vmatprep.subr.bf16.mxu0 0
        %1809 = vmatpush1.bf16.msra.mxu0 0
        %1810 = vmatprep.subr.bf16.mxu0 0
        %1811 = vmatpush1.bf16.msra.mxu0 0
        %1812 = vmatprep.subr.bf16.mxu0 0
        %1813 = vmatpush1.bf16.msra.mxu0 0
        %1814 = vmatprep.subr.bf16.mxu0 0
        %1815 = vmatpush1.bf16.msra.mxu0 0
        %1816 = vmatprep.subr.bf16.mxu0 0
        %1817 = vmatpush1.bf16.msra.mxu0 0
        %1818 = vmatprep.subr.bf16.mxu0 0
        %1819 = vmatpush1.bf16.msra.mxu0 0
        %1820 = vmatprep.subr.bf16.mxu0 0
        %1821 = vmatpush1.bf16.msra.mxu0 0
        %1822 = vmatprep.subr.bf16.mxu0 0
        %1823 = vmatpush1.bf16.msra.mxu0 0
        %1824 = vmatprep.mubr.bf16.mxu0 0
        %1825 = vmatmul.mubr.bf16.gmra.mrb[0].mxu0 %v1420
        %v1826 = vpop.f32.mrb[0].mxu0
        %v1827 = vadd.f32 %v1691, %v1826
        %v1828 = vpop.f32.mrb[0].mxu0
        %v1829 = vpop.f32.mrb[0].mxu0
        %v1830 = vadd.f32 %v1694, %v1829
        %v1831 = vpop.f32.mrb[0].mxu0
        %1832 = vmatprep.mubr.bf16.mxu0 0
        %1833 = vmatmul.mubr.bf16.gmra.mrb[0].mxu0 %v1423
        %v1834 = vpop.f32.mrb[0].mxu0
        %v1835 = vadd.f32 %v1699, %v1834
        %v1836 = vpop.f32.mrb[0].mxu0
        %v1837 = vpop.f32.mrb[0].mxu0
        %v1838 = vadd.f32 %v1702, %v1837
        %v1839 = vpop.f32.mrb[0].mxu0
        %1840 = vmatprep.mubr.bf16.mxu0 0
        %1841 = vmatmul.mubr.bf16.gmra.mrb[0].mxu0 %v1426
        %v1842 = vpop.f32.mrb[0].mxu0
        %v1843 = vadd.f32 %v1707, %v1842
        %v1844 = vpop.f32.mrb[0].mxu0
        %v1845 = vpop.f32.mrb[0].mxu0
        %v1846 = vadd.f32 %v1710, %v1845
        %v1847 = vpop.f32.mrb[0].mxu0
        %1848 = vmatprep.mubr.bf16.mxu0 0
        %1849 = vmatmul.mubr.bf16.gmra.mrb[0].mxu0 %v1429
        %v1850 = vpop.f32.mrb[0].mxu0
        %v1851 = vadd.f32 %v1715, %v1850
        %v1852 = vpop.f32.mrb[0].mxu0
        %v1853 = vpop.f32.mrb[0].mxu0
        %v1854 = vadd.f32 %v1718, %v1853
        %v1855 = vpop.f32.mrb[0].mxu0
        %1856 = vmatprep.mubr.bf16.mxu0 0
        %1857 = vmatmul.mubr.bf16.gmra.mrb[0].mxu0 %v1432
        %v1858 = vpop.f32.mrb[0].mxu0
        %v1859 = vadd.f32 %v1723, %v1858
        %v1860 = vpop.f32.mrb[0].mxu0
        %v1861 = vpop.f32.mrb[0].mxu0
        %v1862 = vadd.f32 %v1726, %v1861
        %v1863 = vpop.f32.mrb[0].mxu0
        %1864 = vmatprep.mubr.bf16.mxu0 0
        %1865 = vmatmul.mubr.bf16.gmra.mrb[0].mxu0 %v1435
        %v1866 = vpop.f32.mrb[0].mxu0
        %v1867 = vadd.f32 %v1731, %v1866
        %v1868 = vpop.f32.mrb[0].mxu0
        %v1869 = vpop.f32.mrb[0].mxu0
        %v1870 = vadd.f32 %v1734, %v1869
        %v1871 = vpop.f32.mrb[0].mxu0
        %1872 = vmatprep.mubr.bf16.mxu0 0
        %1873 = vmatmul.mubr.bf16.gmra.mrb[0].mxu0 %v1438
        %v1874 = vpop.f32.mrb[0].mxu0
        %v1875 = vadd.f32 %v1739, %v1874
        %v1876 = vpop.f32.mrb[0].mxu0
        %v1877 = vpop.f32.mrb[0].mxu0
        %v1878 = vadd.f32 %v1742, %v1877
        %v1879 = vpop.f32.mrb[0].mxu0
        %1880 = vmatprep.mubr.bf16.mxu0 0
        %1881 = vmatmul.mubr.bf16.gmra.mrb[0].mxu0 %v1441
        %v1882 = vpop.f32.mrb[0].mxu0
        %v1883 = vadd.f32 %v1747, %v1882
        %v1884 = vpop.f32.mrb[0].mxu0
        %v1885 = vpop.f32.mrb[0].mxu0
        %v1886 = vadd.f32 %v1750, %v1885
        %v1887 = vpop.f32.mrb[0].mxu0
        %1888 = vmatprep.mubr.bf16.mxu0 0
        %1889 = vmatmul.mubr.bf16.gmra.mrb[0].mxu0 %v1444
        %v1890 = vpop.f32.mrb[0].mxu0
        %v1891 = vadd.f32 %v1755, %v1890
        %v1892 = vpop.f32.mrb[0].mxu0
        %v1893 = vpop.f32.mrb[0].mxu0
        %v1894 = vadd.f32 %v1758, %v1893
        %v1895 = vpop.f32.mrb[0].mxu0
        %1896 = vmatprep.mubr.bf16.mxu0 0
        %1897 = vmatmul.mubr.bf16.gmra.mrb[0].mxu0 %v1447
        %v1898 = vpop.f32.mrb[0].mxu0
        %v1899 = vadd.f32 %v1763, %v1898
        %v1900 = vpop.f32.mrb[0].mxu0
        %v1901 = vpop.f32.mrb[0].mxu0
        %v1902 = vadd.f32 %v1766, %v1901
        %v1903 = vpop.f32.mrb[0].mxu0
        %1904 = vmatprep.mubr.bf16.mxu0 0
        %1905 = vmatmul.mubr.bf16.gmra.mrb[0].mxu0 %v1450
        %v1906 = vpop.f32.mrb[0].mxu0
        %v1907 = vadd.f32 %v1771, %v1906
        %v1908 = vpop.f32.mrb[0].mxu0
        %v1909 = vpop.f32.mrb[0].mxu0
        %v1910 = vadd.f32 %v1774, %v1909
        %v1911 = vpop.f32.mrb[0].mxu0
        %1912 = vmatprep.mubr.bf16.mxu0 0
        %1913 = vmatmul.mubr.bf16.gmra.mrb[0].mxu0 %v1453
        %v1914 = vpop.f32.mrb[0].mxu0
        %v1915 = vadd.f32 %v1779, %v1914
        %v1916 = vpop.f32.mrb[0].mxu0
        %v1917 = vpop.f32.mrb[0].mxu0
        %v1918 = vadd.f32 %v1782, %v1917
        %v1919 = vpop.f32.mrb[0].mxu0
        %1920 = vmatprep.mubr.bf16.mxu0 0
        %1921 = vmatmul.mubr.bf16.gmra.mrb[0].mxu0 %v1456
        %v1922 = vpop.f32.mrb[0].mxu0
        %v1923 = vadd.f32 %v1787, %v1922
        %v1924 = vpop.f32.mrb[0].mxu0
        %v1925 = vpop.f32.mrb[0].mxu0
        %v1926 = vpop.f32.mrb[0].mxu0
        %1927 = vdwg.mxu0
        %v1928 = vmax.f32 %v1827, 0.0
        %v1929 = vmax.f32 %v1830, 0.0
        %v1930 = vmax.f32 %v1835, 0.0
        %v1931 = vmax.f32 %v1838, 0.0
        %v1932 = vmax.f32 %v1843, 0.0
        %v1933 = vmax.f32 %v1846, 0.0
        %v1934 = vmax.f32 %v1851, 0.0
        %v1935 = vmax.f32 %v1854, 0.0
        %v1936 = vmax.f32 %v1859, 0.0
        %v1937 = vmax.f32 %v1862, 0.0
        %v1938 = vmax.f32 %v1867, 0.0
        %v1939 = vmax.f32 %v1870, 0.0
        %v1940 = vmax.f32 %v1875, 0.0
        %v1941 = vmax.f32 %v1878, 0.0
        %v1942 = vmax.f32 %v1883, 0.0
        %v1943 = vmax.f32 %v1886, 0.0
        %v1944 = vmax.f32 %v1891, 0.0
        %v1945 = vmax.f32 %v1894, 0.0
        %v1946 = vmax.f32 %v1899, 0.0
        %v1947 = vmax.f32 %v1902, 0.0
        %v1948 = vmax.f32 %v1907, 0.0
        %v1949 = vmax.f32 %v1910, 0.0
        %v1950 = vmax.f32 %v1915, 0.0
        %v1951 = vmax.f32 %v1918, 0.0
        %v1952 = vmax.f32 %v1923, 0.0
        %v1953 = vpack.c.bf16 %v1929, %v1928
        %v1954 = vpack.c.bf16 %v1931, %v1930
        %v1955 = vpack.c.bf16 %v1933, %v1932
        %v1956 = vpack.c.bf16 %v1935, %v1934
        %v1957 = vpack.c.bf16 %v1937, %v1936
        %v1958 = vpack.c.bf16 %v1939, %v1938
        %v1959 = vpack.c.bf16 %v1941, %v1940
        %v1960 = vpack.c.bf16 %v1943, %v1942
        %v1961 = vpack.c.bf16 %v1945, %v1944
        %v1962 = vpack.c.bf16 %v1947, %v1946
        %v1963 = vpack.c.bf16 %v1949, %v1948
        %v1964 = vpack.c.bf16 %v1951, %v1950
        %v1965 = vpack.c.bf16 %v1952, %v1952
        %v1966 = vld [vmem:[#allocation11] sm:$0xf]
        %v1967 = vld [vmem:[#allocation11 + $0x4] sm:$0xf]
        %v1968 = vld [vmem:[#allocation11 + $0x8] sm:$0xf]
        %v1969 = vld [vmem:[#allocation11 + $0xc] sm:$0xf]
        %v1970 = vld [vmem:[#allocation11 + $0x10] sm:$0xf]
        %v1971 = vld [vmem:[#allocation11 + $0x14] sm:$0xf]
        %v1972 = vld [vmem:[#allocation11 + $0x18] sm:$0xf]
        %v1973 = vld [vmem:[#allocation11 + $0x1c] sm:$0xf]
        %v1974 = vld [vmem:[#allocation11 + $0x20] sm:$0xf]
        %v1975 = vld [vmem:[#allocation11 + $0x24] sm:$0xf]
        %v1976 = vld [vmem:[#allocation11 + $0x28] sm:$0xf]
        %v1977 = vld [vmem:[#allocation11 + $0x2c] sm:$0xf]
        %v1978 = vld [vmem:[#allocation11 + $0x30] sm:$0xf]
        %v1979 = vld [vmem:[#allocation11 + $0x34] sm:$0xf]
        %v1980 = vld [vmem:[#allocation11 + $0x38] sm:$0xf]
        %v1981 = vld [vmem:[#allocation11 + $0x3c] sm:$0xf]
        %v1982 = vld [vmem:[%s8] sm:$0x1]
        %v1984 = vlaneseq
        %v1985 = vshrl.u32 %v1984, 7
        %v1986 = vsub.s32 0, %v1985
        %v1987 = vrot.slane %v1982, %v1986
        %v2005 = vunpack.c.l.b16 %v1966
        %v2006 = vunpack.c.l.b16 %v1967
        %v2007 = vunpack.c.l.b16 %v1968
        %v2008 = vunpack.c.l.b16 %v1969
        %v2009 = vunpack.c.l.b16 %v1970
        %v2010 = vunpack.c.l.b16 %v1971
        %v2011 = vunpack.c.l.b16 %v1972
        %v2012 = vunpack.c.l.b16 %v1973
        %v2013 = vunpack.c.l.b16 %v1974
        %v2014 = vunpack.c.l.b16 %v1975
        %v2015 = vunpack.c.l.b16 %v1976
        %v2016 = vunpack.c.l.b16 %v1977
        %v2017 = vunpack.c.l.b16 %v1978
        %v2018 = vunpack.c.l.b16 %v1979
        %v2019 = vunpack.c.l.b16 %v1980
        %v2020 = vunpack.c.l.b16 %v1981
        %v2021 = vpack.c.b16 %v2006, %v2005
        %v2022 = vpack.c.b16 %v2008, %v2007
        %v2023 = vpack.c.b16 %v2010, %v2009
        %v2024 = vpack.c.b16 %v2012, %v2011
        %v2025 = vpack.c.b16 %v2014, %v2013
        %v2026 = vpack.c.b16 %v2016, %v2015
        %v2027 = vpack.c.b16 %v2018, %v2017
        %v2028 = vpack.c.b16 %v2020, %v2019
        %2037 = vmatprep.subr.bf16.mxu0 0
        %2038 = vmatpush1.bf16.msra.mxu0 %v2021
        %2039 = vmatprep.subr.bf16.mxu0 0
        %2040 = vmatpush1.bf16.msra.mxu0 %v2022
        %2041 = vmatprep.subr.bf16.mxu0 0
        %2042 = vmatpush1.bf16.msra.mxu0 %v2023
        %2043 = vmatprep.subr.bf16.mxu0 0
        %2044 = vmatpush1.bf16.msra.mxu0 %v2024
        %2045 = vmatprep.subr.bf16.mxu0 0
        %2046 = vmatpush1.bf16.msra.mxu0 %v2025
        %2047 = vmatprep.subr.bf16.mxu0 0
        %2048 = vmatpush1.bf16.msra.mxu0 %v2026
        %2049 = vmatprep.subr.bf16.mxu0 0
        %2050 = vmatpush1.bf16.msra.mxu0 %v2027
        %2051 = vmatprep.subr.bf16.mxu0 0
        %2052 = vmatpush1.bf16.msra.mxu0 %v2028
        %2053 = vmatprep.subr.bf16.mxu0 0
        %2054 = vmatpush1.bf16.msra.mxu0 0
        %2055 = vmatprep.subr.bf16.mxu0 0
        %2056 = vmatpush1.bf16.msra.mxu0 0
        %2057 = vmatprep.subr.bf16.mxu0 0
        %2058 = vmatpush1.bf16.msra.mxu0 0
        %2059 = vmatprep.subr.bf16.mxu0 0
        %2060 = vmatpush1.bf16.msra.mxu0 0
        %2061 = vmatprep.subr.bf16.mxu0 0
        %2062 = vmatpush1.bf16.msra.mxu0 0
        %2063 = vmatprep.subr.bf16.mxu0 0
        %2064 = vmatpush1.bf16.msra.mxu0 0
        %2065 = vmatprep.subr.bf16.mxu0 0
        %2066 = vmatpush1.bf16.msra.mxu0 0
        %2067 = vmatprep.subr.bf16.mxu0 0
        %2068 = vmatpush1.bf16.msra.mxu0 0
        %2069 = vmatprep.mubr.bf16.mxu0 0
        %2070 = vmatmul.mubr.bf16.gmra.mrb[0].mxu0 %v1953
        %v2071 = vpop.f32.mrb[0].mxu0
        %v2072 = vadd.f32 %v1987, %v2071
        %v2073 = vpop.f32.mrb[0].mxu0
        %v2074 = vpop.f32.mrb[0].mxu0
        %v2075 = vadd.f32 %v1987, %v2074
        %v2076 = vpop.f32.mrb[0].mxu0
        %2077 = vmatprep.mubr.bf16.mxu0 0
        %2078 = vmatmul.mubr.bf16.gmra.mrb[0].mxu0 %v1954
        %v2079 = vpop.f32.mrb[0].mxu0
        %v2080 = vadd.f32 %v1987, %v2079
        %v2081 = vpop.f32.mrb[0].mxu0
        %v2082 = vpop.f32.mrb[0].mxu0
        %v2083 = vadd.f32 %v1987, %v2082
        %v2084 = vpop.f32.mrb[0].mxu0
        %2085 = vmatprep.mubr.bf16.mxu0 0
        %2086 = vmatmul.mubr.bf16.gmra.mrb[0].mxu0 %v1955
        %v2087 = vpop.f32.mrb[0].mxu0
        %v2088 = vadd.f32 %v1987, %v2087
        %v2089 = vpop.f32.mrb[0].mxu0
        %v2090 = vpop.f32.mrb[0].mxu0
        %v2091 = vadd.f32 %v1987, %v2090
        %v2092 = vpop.f32.mrb[0].mxu0
        %2093 = vmatprep.mubr.bf16.mxu0 0
        %2094 = vmatmul.mubr.bf16.gmra.mrb[0].mxu0 %v1956
        %v2095 = vpop.f32.mrb[0].mxu0
        %v2096 = vadd.f32 %v1987, %v2095
        %v2097 = vpop.f32.mrb[0].mxu0
        %v2098 = vpop.f32.mrb[0].mxu0
        %v2099 = vadd.f32 %v1987, %v2098
        %v2100 = vpop.f32.mrb[0].mxu0
        %2101 = vmatprep.mubr.bf16.mxu0 0
        %2102 = vmatmul.mubr.bf16.gmra.mrb[0].mxu0 %v1957
        %v2103 = vpop.f32.mrb[0].mxu0
        %v2104 = vadd.f32 %v1987, %v2103
        %v2105 = vpop.f32.mrb[0].mxu0
        %v2106 = vpop.f32.mrb[0].mxu0
        %v2107 = vadd.f32 %v1987, %v2106
        %v2108 = vpop.f32.mrb[0].mxu0
        %2109 = vmatprep.mubr.bf16.mxu0 0
        %2110 = vmatmul.mubr.bf16.gmra.mrb[0].mxu0 %v1958
        %v2111 = vpop.f32.mrb[0].mxu0
        %v2112 = vadd.f32 %v1987, %v2111
        %v2113 = vpop.f32.mrb[0].mxu0
        %v2114 = vpop.f32.mrb[0].mxu0
        %v2115 = vadd.f32 %v1987, %v2114
        %v2116 = vpop.f32.mrb[0].mxu0
        %2117 = vmatprep.mubr.bf16.mxu0 0
        %2118 = vmatmul.mubr.bf16.gmra.mrb[0].mxu0 %v1959
        %v2119 = vpop.f32.mrb[0].mxu0
        %v2120 = vadd.f32 %v1987, %v2119
        %v2121 = vpop.f32.mrb[0].mxu0
        %v2122 = vpop.f32.mrb[0].mxu0
        %v2123 = vadd.f32 %v1987, %v2122
        %v2124 = vpop.f32.mrb[0].mxu0
        %2125 = vmatprep.mubr.bf16.mxu0 0
        %2126 = vmatmul.mubr.bf16.gmra.mrb[0].mxu0 %v1960
        %v2127 = vpop.f32.mrb[0].mxu0
        %v2128 = vadd.f32 %v1987, %v2127
        %v2129 = vpop.f32.mrb[0].mxu0
        %v2130 = vpop.f32.mrb[0].mxu0
        %v2131 = vadd.f32 %v1987, %v2130
        %v2132 = vpop.f32.mrb[0].mxu0
        %2133 = vmatprep.mubr.bf16.mxu0 0
        %2134 = vmatmul.mubr.bf16.gmra.mrb[0].mxu0 %v1961
        %v2135 = vpop.f32.mrb[0].mxu0
        %v2136 = vadd.f32 %v1987, %v2135
        %v2137 = vpop.f32.mrb[0].mxu0
        %v2138 = vpop.f32.mrb[0].mxu0
        %v2139 = vadd.f32 %v1987, %v2138
        %v2140 = vpop.f32.mrb[0].mxu0
        %2141 = vmatprep.mubr.bf16.mxu0 0
        %2142 = vmatmul.mubr.bf16.gmra.mrb[0].mxu0 %v1962
        %v2143 = vpop.f32.mrb[0].mxu0
        %v2144 = vadd.f32 %v1987, %v2143
        %v2145 = vpop.f32.mrb[0].mxu0
        %v2146 = vpop.f32.mrb[0].mxu0
        %v2147 = vadd.f32 %v1987, %v2146
        %v2148 = vpop.f32.mrb[0].mxu0
        %2149 = vmatprep.mubr.bf16.mxu0 0
        %2150 = vmatmul.mubr.bf16.gmra.mrb[0].mxu0 %v1963
        %v2151 = vpop.f32.mrb[0].mxu0
        %v2152 = vadd.f32 %v1987, %v2151
        %v2153 = vpop.f32.mrb[0].mxu0
        %v2154 = vpop.f32.mrb[0].mxu0
        %v2155 = vadd.f32 %v1987, %v2154
        %v2156 = vpop.f32.mrb[0].mxu0
        %2157 = vmatprep.mubr.bf16.mxu0 0
        %2158 = vmatmul.mubr.bf16.gmra.mrb[0].mxu0 %v1964
        %v2159 = vpop.f32.mrb[0].mxu0
        %v2160 = vadd.f32 %v1987, %v2159
        %v2161 = vpop.f32.mrb[0].mxu0
        %v2162 = vpop.f32.mrb[0].mxu0
        %v2163 = vadd.f32 %v1987, %v2162
        %v2164 = vpop.f32.mrb[0].mxu0
        %2165 = vmatprep.mubr.bf16.mxu0 0
        %2166 = vmatmul.mubr.bf16.gmra.mrb[0].mxu0 %v1965
        %v2167 = vpop.f32.mrb[0].mxu0
        %v2168 = vadd.f32 %v1987, %v2167
        %v2169 = vpop.f32.mrb[0].mxu0
        %v2170 = vpop.f32.mrb[0].mxu0
        %v2171 = vpop.f32.mrb[0].mxu0
        %2172 = vdwg.mxu0
        %v2173 = vunpack.c.l.bf16 %v528
        %v2174 = vunpack.c.l.bf16 %v529
        %v2175 = vunpack.c.l.bf16 %v530
        %v2176 = vunpack.c.l.bf16 %v531
        %v2177 = vunpack.c.l.bf16 %v532
        %v2178 = vunpack.c.l.bf16 %v533
        %v2179 = vunpack.c.l.bf16 %v534
        %v2180 = vunpack.c.l.bf16 %v535
        %v2181 = vunpack.c.l.bf16 %v536
        %v2182 = vunpack.c.l.bf16 %v537
        %v2183 = vunpack.c.l.bf16 %v538
        %v2184 = vunpack.c.l.bf16 %v539
        %v2185 = vunpack.c.l.bf16 %v540
        %v2186 = vunpack.c.l.bf16 %v541
        %v2187 = vunpack.c.l.bf16 %v542
        %v2188 = vunpack.c.l.bf16 %v543
        %v2189 = vunpack.c.l.bf16 %v544
        %v2190 = vunpack.c.l.bf16 %v545
        %v2191 = vunpack.c.l.bf16 %v546
        %v2192 = vunpack.c.l.bf16 %v547
        %v2193 = vunpack.c.l.bf16 %v548
        %v2194 = vunpack.c.l.bf16 %v549
        %v2195 = vunpack.c.l.bf16 %v550
        %v2196 = vunpack.c.l.bf16 %v551
        %v2197 = vunpack.c.l.bf16 %v552
        %v2198 = vadd.f32 %v2072, %v2173
        %v2199 = vadd.f32 %v2075, %v2174
        %v2200 = vadd.f32 %v2080, %v2175
        %v2201 = vadd.f32 %v2083, %v2176
        %v2202 = vadd.f32 %v2088, %v2177
        %v2203 = vadd.f32 %v2091, %v2178
        %v2204 = vadd.f32 %v2096, %v2179
        %v2205 = vadd.f32 %v2099, %v2180
        %v2206 = vadd.f32 %v2104, %v2181
        %v2207 = vadd.f32 %v2107, %v2182
        %v2208 = vadd.f32 %v2112, %v2183
        %v2209 = vadd.f32 %v2115, %v2184
        %v2210 = vadd.f32 %v2120, %v2185
        %v2211 = vadd.f32 %v2123, %v2186
        %v2212 = vadd.f32 %v2128, %v2187
        %v2213 = vadd.f32 %v2131, %v2188
        %v2214 = vadd.f32 %v2136, %v2189
        %v2215 = vadd.f32 %v2139, %v2190
        %v2216 = vadd.f32 %v2144, %v2191
        %v2217 = vadd.f32 %v2147, %v2192
        %v2218 = vadd.f32 %v2152, %v2193
        %v2219 = vadd.f32 %v2155, %v2194
        %v2220 = vadd.f32 %v2160, %v2195
        %v2221 = vadd.f32 %v2163, %v2196
        %v2222 = vadd.f32 %v2168, %v2197
        %v2223 = vmax.f32 %v2198, 0.0
        %v2224 = vmax.f32 %v2199, 0.0
        %v2225 = vmax.f32 %v2200, 0.0
        %v2226 = vmax.f32 %v2201, 0.0
        %v2227 = vmax.f32 %v2202, 0.0
        %v2228 = vmax.f32 %v2203, 0.0
        %v2229 = vmax.f32 %v2204, 0.0
        %v2230 = vmax.f32 %v2205, 0.0
        %v2231 = vmax.f32 %v2206, 0.0
        %v2232 = vmax.f32 %v2207, 0.0
        %v2233 = vmax.f32 %v2208, 0.0
        %v2234 = vmax.f32 %v2209, 0.0
        %v2235 = vmax.f32 %v2210, 0.0
        %v2236 = vmax.f32 %v2211, 0.0
        %v2237 = vmax.f32 %v2212, 0.0
        %v2238 = vmax.f32 %v2213, 0.0
        %v2239 = vmax.f32 %v2214, 0.0
        %v2240 = vmax.f32 %v2215, 0.0
        %v2241 = vmax.f32 %v2216, 0.0
        %v2242 = vmax.f32 %v2217, 0.0
        %v2243 = vmax.f32 %v2218, 0.0
        %v2244 = vmax.f32 %v2219, 0.0
        %v2245 = vmax.f32 %v2220, 0.0
        %v2246 = vmax.f32 %v2221, 0.0
        %v2247 = vmax.f32 %v2222, 0.0
        %2248 = vst [vmem:[%s515] sm:$0xff] %v2223
        %2249 = vst [vmem:[%s515 + $0x8] sm:$0xff] %v2224
        %2250 = vst [vmem:[%s515 + $0x10] sm:$0xff] %v2225
        %2251 = vst [vmem:[%s515 + $0x18] sm:$0xff] %v2226
        %2252 = vst [vmem:[%s515 + $0x20] sm:$0xff] %v2227
        %2253 = vst [vmem:[%s515 + $0x28] sm:$0xff] %v2228
        %2254 = vst [vmem:[%s515 + $0x30] sm:$0xff] %v2229
        %2255 = vst [vmem:[%s515 + $0x38] sm:$0xff] %v2230
        %2256 = vst [vmem:[%s515 + $0x40] sm:$0xff] %v2231
        %2257 = vst [vmem:[%s515 + $0x48] sm:$0xff] %v2232
        %2258 = vst [vmem:[%s515 + $0x50] sm:$0xff] %v2233
        %2259 = vst [vmem:[%s515 + $0x58] sm:$0xff] %v2234
        %2260 = vst [vmem:[%s515 + $0x60] sm:$0xff] %v2235
        %2261 = vst [vmem:[%s515 + $0x68] sm:$0xff] %v2236
        %2262 = vst [vmem:[%s515 + $0x70] sm:$0xff] %v2237
        %2263 = vst [vmem:[%s515 + $0x78] sm:$0xff] %v2238
        %2264 = vst [vmem:[%s515 + $0x80] sm:$0xff] %v2239
        %2265 = vst [vmem:[%s515 + $0x88] sm:$0xff] %v2240
        %2266 = vst [vmem:[%s515 + $0x90] sm:$0xff] %v2241
        %2267 = vst [vmem:[%s515 + $0x98] sm:$0xff] %v2242
        %2268 = vst [vmem:[%s515 + $0xa0] sm:$0xff] %v2243
        %2269 = vst [vmem:[%s515 + $0xa8] sm:$0xff] %v2244
        %2270 = vst [vmem:[%s515 + $0xb0] sm:$0xff] %v2245
        %2271 = vst [vmem:[%s515 + $0xb8] sm:$0xff] %v2246
        %2272 = vst [vmem:[%s515 + $0xc0] sm:$0xff] %v2247
        %s2273 = sand.u32 %s279, 1
        %s2274 = scalar_lea.sflag [#allocation4], %s2273
        %s2275 = sand.u32 %s279, 1
        %s2276 = smul.addr %s2275, 200
        %s2277 = scalar_lea.vmem [#allocation13], %s2276
        // Predicated region
        $region81: #{tpu_custom_call.1} parent=55 // pred_check
          %p2278 = pneg %p289
        $region82: #{tpu_custom_call.1} parent=55 // pred_check_branch
          %2280 = sbr.rel (%p2278) target = $region84
        $region83: #{tpu_custom_call.1} parent=55 // pred_region
          %s2281 = smul.u32 25, %s36
          %s2283 = ssub.s32 3200, 3200
          %2284 = vsyncadd %s2274, %s2283
          %s2285 = smul.addr %s35, 25
          %s2286 = sadd.s32 %s2281, %s2285
          %s2287 = smul.addr %s2286, 128
          %s2288 = scalar_lea.hbm %s9, %s2287
          %s2289 = sshll.u32 %s2277, 4
          %s2290 = int_to_ptr.vmem [resolvable:$true] %s2289
          %2295 = dma.vmem_to_hbm [thread:$0]  %s2290, 3200, %s2288, %s2274, 128, 128, 8
        $region84: #{tpu_custom_call.1} parent=55 // pred_fallthru
          _
      $region56: #{tpu_custom_call.1} parent=5 // pred_fallthru
        _
      %p2296 = scmp.le.s32.totalorder 2, %s26
      // Predicated region
      $region85: #{tpu_custom_call.1} parent=5 // pred_check
        %p2297 = pneg %p2296
      $region86: #{tpu_custom_call.1} parent=5 // pred_check_branch
        %2299 = sbr.rel (%p2297) target = $region88
      $region87: #{tpu_custom_call.1} parent=5 // pred_region
        %s2300 = ssub.s32 %s26, 2
        // Predicated region
        $region89: #{tpu_custom_call.1} parent=87 // pred_check
          %p2301 = pneg %p295
        $region90: #{tpu_custom_call.1} parent=87 // pred_check_branch
          %2303 = sbr.rel (%p2301) target = $region92
        $region91: #{tpu_custom_call.1} parent=87 // pred_region
          %s2304 = sand.u32 %s280, 1
          %s2305 = scalar_lea.sflag [#allocation4], %s2304
          %s2306 = sand.u32 %s280, 1
          %s2307 = smul.addr %s2306, 200
          %s2308 = scalar_lea.vmem [#allocation13], %s2307
          %2309 = dma.done %s2305, 3200
        $region92: #{tpu_custom_call.1} parent=87 // pred_fallthru
          _
      $region88: #{tpu_custom_call.1} parent=5 // pred_fallthru
        _
    $region6: #{tpu_custom_call.1} parent=1 // loop_footer
      %s30 = sadd.s32 1, %s26
    $region7: #{tpu_custom_call.1} parent=1 // loop_footer_branch
      %25 = sbr.rel target = $region3
    $region8: #{tpu_custom_call.1} parent=1 // loop_exit
      _
    %2310 = vsyncpa [#allocation3], 1
    %s2311 = scalar_lea.sflag [#allocation3], 1
    %2312 = vsyncpa %s2311, 1
    %2313 = vsyncpa [#allocation6], 1
    %s2314 = scalar_lea.sflag [#allocation6], 1
    %2315 = vsyncpa %s2314, 1
    %2316 = vsyncpa [#allocation9], 1
    %2317 = vsyncpa [#allocation12], 1
    %2318 = vsyncpa [#allocation4], 1
    %s2319 = scalar_lea.sflag [#allocation4], 1
    %2320 = vsyncpa %s2319, 1

</llo_original>
